<compile_context>
chip_gen: v7x
topology: tpu7x:2x2x1
jax: 0.10.0
libtpu: 0.0.40
codegen_flags: <defaults>
</compile_context>

<pallas_src>
import functools

import numpy as np
import jax
import jax.numpy as jnp
from jax import lax
from jax.experimental import pallas as pl
from jax.experimental.pallas import tpu as pltpu


# ----------------------------------------------------------------------------
# Kernel
# ----------------------------------------------------------------------------
def _ca_kernel(x_ref, w0_ref, bias_ref, w1_ref, p_ref, out_ref, *, steps, H):
    """Runs `steps` fused CA updates on one block of fused batch elements.

    x_ref    : [1, M, WC]   packed state, M = batch_block*H rows, WC = W*C lanes
    w0_ref   : [3*WC, WH]   row-stacked banded fc0 weights (dh = -1, 0, +1)
                            with the 3x3 perception + identity tap folded in
    bias_ref : [1, WH]      fc0 bias tiled over W (float32)
    w1_ref   : [WH, WC]     block-diagonal fc1 weight (no bias)
    p_ref    : [WC, WC]     alive-count matrix (alpha pick + W-pool + broadcast)
    out_ref  : [1, M, WC]
    """
    f32 = jnp.float32
    x0 = x_ref[0].astype(f32)                        # [M, WC]
    M, WC = x0.shape
    WH = bias_ref.shape[-1]
    wdt = w0_ref.dtype                               # bf16 (or f32) MXU inputs
    thr = f32(0.1)

    # --- loop-invariant values, hoisted once -------------------------------
    # JAX does not CSE broadcast_in_dim, so broadcast the bias here, not in the
    # step body.
    bias_b = jnp.broadcast_to(bias_ref[...].astype(f32), (M, WH))
    # Boundary-row masks for the circular sublane rolls: zero the row that
    # wrapped across the top/bottom edge of each fused image (also prevents
    # cross-batch leakage when several batch elements are fused into M).
    row = lax.broadcasted_iota(jnp.int32, (M, 1), 0) % H
    mask_dn = (row != 0).astype(f32)                 # row 0 of each image
    mask_up = (row != H - 1).astype(f32)             # last row of each image

    def mxu(a, b_ref):
        return jnp.dot(a.astype(wdt), b_ref[...], preferred_element_type=f32)

    def shift_rows(x):
        # x_up[i] = x[i + 1] (0 past the bottom edge), x_dn[i] = x[i - 1]
        # (0 past the top edge).  pltpu.roll follows jnp.roll semantics
        # (out[i] = in[(i - shift) mod M]); the masks kill the wrapped row.
        x_dn = pltpu.roll(x, shift=1, axis=0) * mask_dn
        x_up = pltpu.roll(x, shift=M - 1, axis=0) * mask_up
        return x_up, x_dn

    def step(_, x):
        x_up, x_dn = shift_rows(x)

        # fc0: 3x3 depthwise perception folded into ONE banded matmul, K=3*WC.
        xcat = jnp.concatenate([x_dn, x, x_up], axis=1)      # [M, 3*WC]
        h = jnp.maximum(mxu(xcat, w0_ref) + bias_b, 0.0)     # [M, WH]
        x_new = x + mxu(h, w1_ref)                           # [M, WC]

        # Alive masks: "any alpha in the 3x3 neighbourhood > 0.1", computed as
        # an exact integer neighbour count; pre/post fused into one [2M, WC]
        # matmul against the alive-count matrix.
        xn_up, xn_dn = shift_rows(x_new)
        ind_pre = ((x > thr).astype(f32) + (x_up > thr).astype(f32)
                   + (x_dn > thr).astype(f32))
        ind_post = ((x_new > thr).astype(f32) + (xn_up > thr).astype(f32)
                    + (xn_dn > thr).astype(f32))
        cnt = mxu(jnp.concatenate([ind_pre, ind_post], axis=0), p_ref)
        life = (jnp.minimum(cnt[:M], cnt[M:]) > 0.0).astype(f32)
        return x_new * life

    # Unrolling gives the LLO scheduler cross-iteration visibility (weight
    # loads / threshold VPU work overlap the previous step's MXU tail).
    unroll = True if steps <= 8 else 4
    xf = lax.fori_loop(0, steps, step, x0, unroll=unroll)
    out_ref[0] = xf.astype(out_ref.dtype)


# ----------------------------------------------------------------------------
# Host-side weight folding
# ----------------------------------------------------------------------------
def build_packed_weights(fc0_w, fc0_b, fc1_w, *, W, C, angle,
                         weight_dtype=jnp.bfloat16):
    """Folds the CA update into MXU-friendly packed matrices.

    fc0_w: [HID, 3C] (torch layout), fc0_b: [HID], fc1_w: [C, HID].
    Returns (w0_stacked [3*W*C, W*HID], bias [1, W*HID] f32,
             w1 [W*HID, W*C], pmat [W*C, W*C]).
    """
    HID = fc0_w.shape[0]
    assert fc0_w.shape[1] == 3 * C
    w0t = jnp.asarray(fc0_w, jnp.float32).T                  # [3C, HID]
    w0a, w0b, w0c = w0t[:C], w0t[C:2 * C], w0t[2 * C:3 * C]

    # Perception filters.  The reference convolves in the transpose(1, 3)
    # layout ([B, C, W, H]); in (H, W) index space that is the TRANSPOSED
    # filter, hence fa = f1.T / fb = f2.T.
    dxf = np.outer([1, 2, 1], [-1, 0, 1]) / 8.0
    dyf = dxf.T
    cth = np.cos(angle * np.pi / 180.0)
    sth = np.sin(angle * np.pi / 180.0)
    fa = (cth * dxf - sth * dyf).T
    fb = (sth * dxf + cth * dyf).T

    def eye_w(k):
        return jnp.eye(W, k=k, dtype=jnp.float32)

    bmats = []
    for dh in (-1, 0, 1):
        m = jnp.zeros((W * C, W * HID), jnp.float32)
        for dw in (-1, 0, 1):
            tap = (jnp.float32(fa[dh + 1, dw + 1]) * w0b
                   + jnp.float32(fb[dh + 1, dw + 1]) * w0c)
            if dh == 0 and dw == 0:
                tap = tap + w0a                              # identity tap (raw x)
            # contribution of source pixel j' = j + dw to target pixel j
            m = m + jnp.kron(eye_w(-dw), tap)
        bmats.append(m)
    # Row-stacked so one matmul with LHS = [x_dn | x | x_up] covers all three
    # H-offsets (dh = -1, 0, +1) in a single MXU accumulation chain.
    w0_stacked = jnp.concatenate(bmats, axis=0).astype(weight_dtype)

    w1 = jnp.kron(jnp.eye(W, dtype=jnp.float32),
                  jnp.asarray(fc1_w, jnp.float32).T).astype(weight_dtype)
    bias = jnp.tile(jnp.asarray(fc0_b, jnp.float32), W).reshape(1, W * HID)

    # Alive-count matrix: pmat[j'*C + 3, j*C + c] = 1 for |j' - j| <= 1
    # (picks the alpha channel, pools over W neighbours, broadcasts over C).
    # 0/1 entries: exact in bf16 too.
    sel = np.zeros((C, C), np.float32)
    sel[3, :] = 1.0
    band = (np.abs(np.arange(W)[:, None] - np.arange(W)[None, :]) <= 1)
    pmat = jnp.asarray(np.kron(band.astype(np.float32), sel)).astype(weight_dtype)
    return w0_stacked, bias, w1, pmat


# ----------------------------------------------------------------------------
# Wrapper
# ----------------------------------------------------------------------------
def ca_forward(x, params, *, steps=1, fire_rate=None, angle=0.0,
               weight_dtype=jnp.bfloat16, batch_block=None):
    """x: [B, H, W, C] float32 (NHWC). params = (fc0_w, fc0_b, fc1_w)."""
    # TODO(synk): fire_rate is accepted but never used by the reference
    # update() (no stochastic firing in the given module), so it is ignored.
    fc0_w, fc0_b, fc1_w = params
    B, H, W, C = x.shape
    HID = fc0_w.shape[0]
    assert C >= 4, "alive() uses channel 3"

    # Batch fusion into the matmul M dimension.  Default keeps >= 2 grid steps
    # when possible so v7x's two TensorCores both get a block ("parallel" grid
    # axis); on single-core v5e/v6e pass batch_block=B to fuse the whole batch
    # into one grid step (M = B*H rows per matmul, half the MXU invocations).
    if batch_block is None:
        batch_block = max(1, B // 2)
    while B % batch_block:
        batch_block -= 1
    G = B // batch_block
    M = batch_block * H
    WC, WH = W * C, W * HID

    w0, bias, w1, pmat = build_packed_weights(
        fc0_w, fc0_b, fc1_w, W=W, C=C, angle=angle, weight_dtype=weight_dtype)

    xp = x.reshape(G, M, WC)              # lane-dense packing (WC = 128 here)
    kernel = functools.partial(_ca_kernel, steps=steps, H=H)
    const = lambda g: (0, 0)              # weights: same block every grid step
    out = pl.pallas_call(
        kernel,
        out_shape=jax.ShapeDtypeStruct((G, M, WC), x.dtype),
        grid_spec=pltpu.PrefetchScalarGridSpec(
            num_scalar_prefetch=0,
            grid=(G,),
            in_specs=[
                pl.BlockSpec((1, M, WC), lambda g: (g, 0, 0)),
                pl.BlockSpec((3 * WC, WH), const),
                pl.BlockSpec((1, WH), const),
                pl.BlockSpec((WH, WC), const),
                pl.BlockSpec((WC, WC), const),
            ],
            out_specs=pl.BlockSpec((1, M, WC), lambda g: (g, 0, 0)),
        ),
        compiler_params=pltpu.CompilerParams(
            dimension_semantics=("parallel",)),
    )(xp, w0, bias, w1, pmat)
    return out.reshape(B, H, W, C)


# ----------------------------------------------------------------------------
# Pure-JAX transliteration of the PyTorch module (for verification)
# ----------------------------------------------------------------------------
def ca_reference(x, params, *, steps=1, angle=0.0):
    fc0_w, fc0_b, fc1_w = params
    dxf = np.outer([1, 2, 1], [-1, 0, 1]) / 8.0
    dyf = dxf.T
    cth = np.cos(angle * np.pi / 180.0)
    sth = np.sin(angle * np.pi / 180.0)
    f1 = cth * dxf - sth * dyf
    f2 = sth * dxf + cth * dyf

    def shifts(p, a):
        Wd, Hd = a.shape[2], a.shape[3]
        return [[p[:, :, u:u + Wd, v:v + Hd] for v in range(3)]
                for u in range(3)]

    def depthwise(xt, filt):                      # xt [B, C, W, H]
        p = jnp.pad(xt, ((0, 0), (0, 0), (1, 1), (1, 1)))
        s = shifts(p, xt)
        out = jnp.zeros_like(xt)
        for u in range(3):
            for v in range(3):
                out = out + jnp.float32(filt[u, v]) * s[u][v]
        return out

    def maxpool3(a):                              # a [B, 1, W, H]
        p = jnp.pad(a, ((0, 0), (0, 0), (1, 1), (1, 1)),
                    constant_values=-jnp.inf)
        s = shifts(p, a)
        m = s[0][0]
        for u in range(3):
            for v in range(3):
                m = jnp.maximum(m, s[u][v])
        return m

    hp = jax.lax.Precision.HIGHEST
    for _ in range(steps):
        xt = jnp.transpose(x, (0, 3, 2, 1))       # x.transpose(1, 3)
        pre = maxpool3(xt[:, 3:4]) > 0.1
        y1 = depthwise(xt, f1)
        y2 = depthwise(xt, f2)
        y = jnp.concatenate([xt, y1, y2], axis=1)
        d = jnp.transpose(y, (0, 3, 2, 1))        # [B, H, W, 3C]
        d = jnp.dot(d, fc0_w.T, precision=hp) + fc0_b
        d = jnp.maximum(d, 0.0)
        d = jnp.dot(d, fc1_w.T, precision=hp)
        xt = xt + jnp.transpose(d, (0, 3, 2, 1))
        post = maxpool3(xt[:, 3:4]) > 0.1
        life = (pre & post).astype(jnp.float32)
        xt = xt * life
        x = jnp.transpose(xt, (0, 3, 2, 1))
    return x


# ----------------------------------------------------------------------------
# Demo / self-check
# ----------------------------------------------------------------------------
if __name__ == "__main__":
    B, H, W, CH, HID = 2, 16, 16, 8, 32           # W*CH = 128 -> lane dense

    key = jax.random.PRNGKey(0)
    kx, ka, k0, k1, k2 = jax.random.split(key, 5)

    x = 0.5 * jax.random.normal(kx, (B, H, W, CH), jnp.float32)
    # Keep the alpha channel far from the 0.1 life threshold so the kernel /
    # reference comparison cannot be flipped by matmul rounding (bf16 path).
    alpha = jnp.where(jax.random.uniform(ka, (B, H, W)) > 0.6, 1.0, -0.5)
    x = x.at[:, :, :, 3].set(alpha)

    # torch-layout parameters: fc0 [HID, 3C] (+bias), fc1 [C, HID] (no bias).
    lim = 1.0 / np.sqrt(3 * CH)
    fc0_w = jax.random.uniform(k0, (HID, 3 * CH), jnp.float32, -lim, lim)
    fc0_b = jax.random.uniform(k1, (HID,), jnp.float32, -lim, lim)
    # The module zero-inits fc1 (first case).  A non-zero fc1 (legal trained
    # state) also exercises the fused fc1 matmul; its alpha row is zeroed so
    # life-threshold decisions stay exact on both sides.
    fc1_zero = jnp.zeros((CH, HID), jnp.float32)
    fc1_rand = 0.05 * jax.random.normal(k2, (CH, HID), jnp.float32)
    fc1_rand = fc1_rand.at[3, :].set(0.0)

    for fc1_w in (fc1_zero, fc1_rand):
        params = (fc0_w, fc0_b, fc1_w)
        ref = jax.block_until_ready(
            ca_reference(x, params, steps=2, angle=0.0))
        # (a) default: grid=(2,), one batch element per TensorCore (v7x),
        # (b) fully fused batch: grid=(1,), M = B*H rows (v5e / v6e),
        # (c) float32-weight fallback path (bit-faithful near the threshold).
        for kwargs in ({}, {"batch_block": B}, {"weight_dtype": jnp.float32}):
            out = jax.block_until_ready(
                ca_forward(x, params, steps=2, fire_rate=None, angle=0.0,
                           **kwargs))
            assert out.shape == (B, H, W, CH)
            assert bool(jnp.all(jnp.isfinite(out)))
            np.testing.assert_allclose(np.asarray(out), np.asarray(ref),
                                       rtol=1e-2, atol=1e-2)

    print("KERNEL_OK")
</pallas_src>

<mosaic_0001>
module attributes {stable_mosaic.version = 11 : i64} {
  func.func @_ca_kernel(%arg0: i32, %arg1: memref<1x16x128xf32, #tpu.memory_space<vmem>>, %arg2: memref<384x512xbf16, #tpu.memory_space<vmem>>, %arg3: memref<1x512xf32, #tpu.memory_space<vmem>>, %arg4: memref<512x128xbf16, #tpu.memory_space<vmem>>, %arg5: memref<128x128xbf16, #tpu.memory_space<vmem>>, %arg6: memref<1x16x128xf32, #tpu.memory_space<vmem>>) attributes {dimension_semantics = [#tpu.dimension_semantics<parallel>], iteration_bounds = array<i64: 2>, scalar_prefetch = 0 : i64, scratch_operands = 0 : i64, tpu.core_type = #tpu.core_type<tc>, window_params = [{transform_indices = @transform_0, window_bounds = array<i64: 1, 16, 128>}, {pipeline_mode = #tpu.pipeline_mode<synchronous>, transform_indices = @transform_1, window_bounds = array<i64: 384, 512>}, {pipeline_mode = #tpu.pipeline_mode<synchronous>, transform_indices = @transform_2, window_bounds = array<i64: 1, 512>}, {pipeline_mode = #tpu.pipeline_mode<synchronous>, transform_indices = @transform_3, window_bounds = array<i64: 512, 128>}, {pipeline_mode = #tpu.pipeline_mode<synchronous>, transform_indices = @transform_4, window_bounds = array<i64: 128, 128>}, {transform_indices = @transform_5, window_bounds = array<i64: 1, 16, 128>}]} {
    %c0 = arith.constant 0 : index
    %c0_0 = arith.constant 0 : index
    %c0_1 = arith.constant 0 : index
    %0 = vector.load %arg1[%c0, %c0_0, %c0_1] : memref<1x16x128xf32, #tpu.memory_space<vmem>>, vector<1x16x128xf32>
    %1 = vector.shape_cast %0 : vector<1x16x128xf32> to vector<16x128xf32>
    %c0_2 = arith.constant 0 : index
    %c0_3 = arith.constant 0 : index
    %2 = vector.load %arg3[%c0_2, %c0_3] : memref<1x512xf32, #tpu.memory_space<vmem>>, vector<1x512xf32>
    %3 = vector.shape_cast %2 : vector<1x512xf32> to vector<1x512xf32>
    %4 = vector.broadcast %3 : vector<1x512xf32> to vector<16x512xf32>
    %5 = tpu.iota {dimensions = array<i32: 0>} : vector<16x1xi32>
    %c16_i32 = arith.constant 16 : i32
    %c0_i32 = arith.constant 0 : i32
    %6 = arith.cmpi eq, %c16_i32, %c0_i32 : i32
    %c1_i32 = arith.constant 1 : i32
    %7 = arith.select %6, %c1_i32, %c16_i32 : i32
    %8 = vector.broadcast %7 : i32 to vector<16x1xi32>
    %9 = arith.remsi %5, %8 : vector<16x1xi32>
    %c0_i32_4 = arith.constant 0 : i32
    %10 = vector.broadcast %c0_i32_4 : i32 to vector<16x1xi32>
    %11 = arith.cmpi ne, %9, %10 : vector<16x1xi32>
    %c0_i32_5 = arith.constant 0 : i32
    %12 = vector.broadcast %c0_i32_5 : i32 to vector<16x1xi32>
    %13 = arith.cmpi slt, %9, %12 : vector<16x1xi32>
    %c0_i32_6 = arith.constant 0 : i32
    %14 = arith.cmpi slt, %7, %c0_i32_6 : i32
    %15 = vector.broadcast %14 : i1 to vector<16x1xi1>
    %16 = vector.broadcast %15 : vector<16x1xi1> to vector<16x1xi1>
    %17 = arith.xori %13, %16 : vector<16x1xi1>
    %18 = arith.andi %17, %11 : vector<16x1xi1>
    %19 = vector.broadcast %7 : i32 to vector<16x1xi32>
    %20 = arith.addi %9, %19 : vector<16x1xi32>
    %21 = arith.select %18, %20, %9 : vector<16x1xi1>, vector<16x1xi32>
    %c0_i32_7 = arith.constant 0 : i32
    %22 = vector.broadcast %c0_i32_7 : i32 to vector<16x1xi32>
    %23 = arith.cmpi ne, %21, %22 : vector<16x1xi32>
    %24 = arith.extui %23 : vector<16x1xi1> to vector<16x1xi32>
    %25 = arith.sitofp %24 : vector<16x1xi32> to vector<16x1xf32>
    %c15_i32 = arith.constant 15 : i32
    %26 = vector.broadcast %c15_i32 : i32 to vector<16x1xi32>
    %27 = arith.cmpi ne, %21, %26 : vector<16x1xi32>
    %28 = arith.extui %27 : vector<16x1xi1> to vector<16x1xi32>
    %29 = arith.sitofp %28 : vector<16x1xi32> to vector<16x1xf32>
    %cst = arith.constant 1.000000e-01 : f32
    %c0_i32_8 = arith.constant 0 : i32
    %c1_i32_9 = arith.constant 1 : i32
    %30 = tpu.dynamic_rotate %1 by %c1_i32_9 dim 0 : vector<16x128xf32>, i32 -> vector<16x128xf32>
    %31 = vector.broadcast %25 : vector<16x1xf32> to vector<16x128xf32>
    %32 = arith.mulf %30, %31 : vector<16x128xf32>
    %c15_i32_10 = arith.constant 15 : i32
    %33 = tpu.dynamic_rotate %1 by %c15_i32_10 dim 0 : vector<16x128xf32>, i32 -> vector<16x128xf32>
    %34 = vector.broadcast %29 : vector<16x1xf32> to vector<16x128xf32>
    %35 = arith.mulf %33, %34 : vector<16x128xf32>
    %36 = tpu.concatenate %32, %1, %35 in 1 : vector<16x128xf32>, vector<16x128xf32>, vector<16x128xf32> -> vector<16x384xf32>
    %37 = arith.truncf %36 : vector<16x384xf32> to vector<16x384xbf16>
    %c0_11 = arith.constant 0 : index
    %c0_12 = arith.constant 0 : index
    %38 = vector.load %arg2[%c0_11, %c0_12] : memref<384x512xbf16, #tpu.memory_space<vmem>>, vector<384x512xbf16>
    %cst_13 = arith.constant dense<0.000000e+00> : vector<16x512xf32>
    %39 = tpu.matmul %37, %38, %cst_13 {dimension_numbers = #tpu.dot_dimension_numbers<[1], [0], [0], [1], [0, 0, 1, 1], [], []>} : vector<16x384xbf16>, vector<384x512xbf16>, vector<16x512xf32> -> vector<16x512xf32>
    %40 = arith.addf %39, %4 : vector<16x512xf32>
    %cst_14 = arith.constant 0.000000e+00 : f32
    %41 = vector.broadcast %cst_14 : f32 to vector<16x512xf32>
    %42 = arith.maximumf %40, %41 : vector<16x512xf32>
    %43 = arith.truncf %42 : vector<16x512xf32> to vector<16x512xbf16>
    %c0_15 = arith.constant 0 : index
    %c0_16 = arith.constant 0 : index
    %44 = vector.load %arg4[%c0_15, %c0_16] : memref<512x128xbf16, #tpu.memory_space<vmem>>, vector<512x128xbf16>
    %cst_17 = arith.constant dense<0.000000e+00> : vector<16x128xf32>
    %45 = tpu.matmul %43, %44, %cst_17 {dimension_numbers = #tpu.dot_dimension_numbers<[1], [0], [0], [1], [0, 0, 1, 1], [], []>} : vector<16x512xbf16>, vector<512x128xbf16>, vector<16x128xf32> -> vector<16x128xf32>
    %46 = arith.addf %1, %45 : vector<16x128xf32>
    %c1_i32_18 = arith.constant 1 : i32
    %47 = tpu.dynamic_rotate %46 by %c1_i32_18 dim 0 : vector<16x128xf32>, i32 -> vector<16x128xf32>
    %48 = vector.broadcast %25 : vector<16x1xf32> to vector<16x128xf32>
    %49 = arith.mulf %47, %48 : vector<16x128xf32>
    %c15_i32_19 = arith.constant 15 : i32
    %50 = tpu.dynamic_rotate %46 by %c15_i32_19 dim 0 : vector<16x128xf32>, i32 -> vector<16x128xf32>
    %51 = vector.broadcast %29 : vector<16x1xf32> to vector<16x128xf32>
    %52 = arith.mulf %50, %51 : vector<16x128xf32>
    %53 = vector.broadcast %cst : f32 to vector<16x128xf32>
    %54 = arith.cmpf ogt, %1, %53 : vector<16x128xf32>
    %55 = arith.extui %54 : vector<16x128xi1> to vector<16x128xi32>
    %56 = arith.sitofp %55 : vector<16x128xi32> to vector<16x128xf32>
    %57 = vector.broadcast %cst : f32 to vector<16x128xf32>
    %58 = arith.cmpf ogt, %35, %57 : vector<16x128xf32>
    %59 = arith.extui %58 : vector<16x128xi1> to vector<16x128xi32>
    %60 = arith.sitofp %59 : vector<16x128xi32> to vector<16x128xf32>
    %61 = arith.addf %56, %60 : vector<16x128xf32>
    %62 = vector.broadcast %cst : f32 to vector<16x128xf32>
    %63 = arith.cmpf ogt, %32, %62 : vector<16x128xf32>
    %64 = arith.extui %63 : vector<16x128xi1> to vector<16x128xi32>
    %65 = arith.sitofp %64 : vector<16x128xi32> to vector<16x128xf32>
    %66 = arith.addf %61, %65 : vector<16x128xf32>
    %67 = vector.broadcast %cst : f32 to vector<16x128xf32>
    %68 = arith.cmpf ogt, %46, %67 : vector<16x128xf32>
    %69 = arith.extui %68 : vector<16x128xi1> to vector<16x128xi32>
    %70 = arith.sitofp %69 : vector<16x128xi32> to vector<16x128xf32>
    %71 = vector.broadcast %cst : f32 to vector<16x128xf32>
    %72 = arith.cmpf ogt, %52, %71 : vector<16x128xf32>
    %73 = arith.extui %72 : vector<16x128xi1> to vector<16x128xi32>
    %74 = arith.sitofp %73 : vector<16x128xi32> to vector<16x128xf32>
    %75 = arith.addf %70, %74 : vector<16x128xf32>
    %76 = vector.broadcast %cst : f32 to vector<16x128xf32>
    %77 = arith.cmpf ogt, %49, %76 : vector<16x128xf32>
    %78 = arith.extui %77 : vector<16x128xi1> to vector<16x128xi32>
    %79 = arith.sitofp %78 : vector<16x128xi32> to vector<16x128xf32>
    %80 = arith.addf %75, %79 : vector<16x128xf32>
    %81 = tpu.concatenate %66, %80 in 0 : vector<16x128xf32>, vector<16x128xf32> -> vector<32x128xf32>
    %82 = arith.truncf %81 : vector<32x128xf32> to vector<32x128xbf16>
    %c0_20 = arith.constant 0 : index
    %c0_21 = arith.constant 0 : index
    %83 = vector.load %arg5[%c0_20, %c0_21] : memref<128x128xbf16, #tpu.memory_space<vmem>>, vector<128x128xbf16>
    %cst_22 = arith.constant dense<0.000000e+00> : vector<32x128xf32>
    %84 = tpu.matmul %82, %83, %cst_22 {dimension_numbers = #tpu.dot_dimension_numbers<[1], [0], [0], [1], [0, 0, 1, 1], [], []>} : vector<32x128xbf16>, vector<128x128xbf16>, vector<32x128xf32> -> vector<32x128xf32>
    %85 = vector.extract_strided_slice %84 {offsets = [0, 0], sizes = [16, 128], strides = [1, 1]} : vector<32x128xf32> to vector<16x128xf32>
    %86 = vector.extract_strided_slice %84 {offsets = [16, 0], sizes = [16, 128], strides = [1, 1]} : vector<32x128xf32> to vector<16x128xf32>
    %87 = arith.minimumf %85, %86 : vector<16x128xf32>
    %cst_23 = arith.constant 0.000000e+00 : f32
    %88 = vector.broadcast %cst_23 : f32 to vector<16x128xf32>
    %89 = arith.cmpf ogt, %87, %88 : vector<16x128xf32>
    %90 = arith.extui %89 : vector<16x128xi1> to vector<16x128xi32>
    %91 = arith.sitofp %90 : vector<16x128xi32> to vector<16x128xf32>
    %92 = arith.mulf %46, %91 : vector<16x128xf32>
    %c1_i32_24 = arith.constant 1 : i32
    %c1_i32_25 = arith.constant 1 : i32
    %93 = tpu.dynamic_rotate %92 by %c1_i32_25 dim 0 : vector<16x128xf32>, i32 -> vector<16x128xf32>
    %94 = vector.broadcast %25 : vector<16x1xf32> to vector<16x128xf32>
    %95 = arith.mulf %93, %94 : vector<16x128xf32>
    %c15_i32_26 = arith.constant 15 : i32
    %96 = tpu.dynamic_rotate %92 by %c15_i32_26 dim 0 : vector<16x128xf32>, i32 -> vector<16x128xf32>
    %97 = vector.broadcast %29 : vector<16x1xf32> to vector<16x128xf32>
    %98 = arith.mulf %96, %97 : vector<16x128xf32>
    %99 = tpu.concatenate %95, %92, %98 in 1 : vector<16x128xf32>, vector<16x128xf32>, vector<16x128xf32> -> vector<16x384xf32>
    %100 = arith.truncf %99 : vector<16x384xf32> to vector<16x384xbf16>
    %c0_27 = arith.constant 0 : index
    %c0_28 = arith.constant 0 : index
    %101 = vector.load %arg2[%c0_27, %c0_28] : memref<384x512xbf16, #tpu.memory_space<vmem>>, vector<384x512xbf16>
    %cst_29 = arith.constant dense<0.000000e+00> : vector<16x512xf32>
    %102 = tpu.matmul %100, %101, %cst_29 {dimension_numbers = #tpu.dot_dimension_numbers<[1], [0], [0], [1], [0, 0, 1, 1], [], []>} : vector<16x384xbf16>, vector<384x512xbf16>, vector<16x512xf32> -> vector<16x512xf32>
    %103 = arith.addf %102, %4 : vector<16x512xf32>
    %cst_30 = arith.constant 0.000000e+00 : f32
    %104 = vector.broadcast %cst_30 : f32 to vector<16x512xf32>
    %105 = arith.maximumf %103, %104 : vector<16x512xf32>
    %106 = arith.truncf %105 : vector<16x512xf32> to vector<16x512xbf16>
    %c0_31 = arith.constant 0 : index
    %c0_32 = arith.constant 0 : index
    %107 = vector.load %arg4[%c0_31, %c0_32] : memref<512x128xbf16, #tpu.memory_space<vmem>>, vector<512x128xbf16>
    %cst_33 = arith.constant dense<0.000000e+00> : vector<16x128xf32>
    %108 = tpu.matmul %106, %107, %cst_33 {dimension_numbers = #tpu.dot_dimension_numbers<[1], [0], [0], [1], [0, 0, 1, 1], [], []>} : vector<16x512xbf16>, vector<512x128xbf16>, vector<16x128xf32> -> vector<16x128xf32>
    %109 = arith.addf %92, %108 : vector<16x128xf32>
    %c1_i32_34 = arith.constant 1 : i32
    %110 = tpu.dynamic_rotate %109 by %c1_i32_34 dim 0 : vector<16x128xf32>, i32 -> vector<16x128xf32>
    %111 = vector.broadcast %25 : vector<16x1xf32> to vector<16x128xf32>
    %112 = arith.mulf %110, %111 : vector<16x128xf32>
    %c15_i32_35 = arith.constant 15 : i32
    %113 = tpu.dynamic_rotate %109 by %c15_i32_35 dim 0 : vector<16x128xf32>, i32 -> vector<16x128xf32>
    %114 = vector.broadcast %29 : vector<16x1xf32> to vector<16x128xf32>
    %115 = arith.mulf %113, %114 : vector<16x128xf32>
    %116 = vector.broadcast %cst : f32 to vector<16x128xf32>
    %117 = arith.cmpf ogt, %92, %116 : vector<16x128xf32>
    %118 = arith.extui %117 : vector<16x128xi1> to vector<16x128xi32>
    %119 = arith.sitofp %118 : vector<16x128xi32> to vector<16x128xf32>
    %120 = vector.broadcast %cst : f32 to vector<16x128xf32>
    %121 = arith.cmpf ogt, %98, %120 : vector<16x128xf32>
    %122 = arith.extui %121 : vector<16x128xi1> to vector<16x128xi32>
    %123 = arith.sitofp %122 : vector<16x128xi32> to vector<16x128xf32>
    %124 = arith.addf %119, %123 : vector<16x128xf32>
    %125 = vector.broadcast %cst : f32 to vector<16x128xf32>
    %126 = arith.cmpf ogt, %95, %125 : vector<16x128xf32>
    %127 = arith.extui %126 : vector<16x128xi1> to vector<16x128xi32>
    %128 = arith.sitofp %127 : vector<16x128xi32> to vector<16x128xf32>
    %129 = arith.addf %124, %128 : vector<16x128xf32>
    %130 = vector.broadcast %cst : f32 to vector<16x128xf32>
    %131 = arith.cmpf ogt, %109, %130 : vector<16x128xf32>
    %132 = arith.extui %131 : vector<16x128xi1> to vector<16x128xi32>
    %133 = arith.sitofp %132 : vector<16x128xi32> to vector<16x128xf32>
    %134 = vector.broadcast %cst : f32 to vector<16x128xf32>
    %135 = arith.cmpf ogt, %115, %134 : vector<16x128xf32>
    %136 = arith.extui %135 : vector<16x128xi1> to vector<16x128xi32>
    %137 = arith.sitofp %136 : vector<16x128xi32> to vector<16x128xf32>
    %138 = arith.addf %133, %137 : vector<16x128xf32>
    %139 = vector.broadcast %cst : f32 to vector<16x128xf32>
    %140 = arith.cmpf ogt, %112, %139 : vector<16x128xf32>
    %141 = arith.extui %140 : vector<16x128xi1> to vector<16x128xi32>
    %142 = arith.sitofp %141 : vector<16x128xi32> to vector<16x128xf32>
    %143 = arith.addf %138, %142 : vector<16x128xf32>
    %144 = tpu.concatenate %129, %143 in 0 : vector<16x128xf32>, vector<16x128xf32> -> vector<32x128xf32>
    %145 = arith.truncf %144 : vector<32x128xf32> to vector<32x128xbf16>
    %c0_36 = arith.constant 0 : index
    %c0_37 = arith.constant 0 : index
    %146 = vector.load %arg5[%c0_36, %c0_37] : memref<128x128xbf16, #tpu.memory_space<vmem>>, vector<128x128xbf16>
    %cst_38 = arith.constant dense<0.000000e+00> : vector<32x128xf32>
    %147 = tpu.matmul %145, %146, %cst_38 {dimension_numbers = #tpu.dot_dimension_numbers<[1], [0], [0], [1], [0, 0, 1, 1], [], []>} : vector<32x128xbf16>, vector<128x128xbf16>, vector<32x128xf32> -> vector<32x128xf32>
    %148 = vector.extract_strided_slice %147 {offsets = [0, 0], sizes = [16, 128], strides = [1, 1]} : vector<32x128xf32> to vector<16x128xf32>
    %149 = vector.extract_strided_slice %147 {offsets = [16, 0], sizes = [16, 128], strides = [1, 1]} : vector<32x128xf32> to vector<16x128xf32>
    %150 = arith.minimumf %148, %149 : vector<16x128xf32>
    %cst_39 = arith.constant 0.000000e+00 : f32
    %151 = vector.broadcast %cst_39 : f32 to vector<16x128xf32>
    %152 = arith.cmpf ogt, %150, %151 : vector<16x128xf32>
    %153 = arith.extui %152 : vector<16x128xi1> to vector<16x128xi32>
    %154 = arith.sitofp %153 : vector<16x128xi32> to vector<16x128xf32>
    %155 = arith.mulf %109, %154 : vector<16x128xf32>
    %c0_40 = arith.constant 0 : index
    %c0_41 = arith.constant 0 : index
    %c0_42 = arith.constant 0 : index
    %156 = vector.load %arg6[%c0_40, %c0_41, %c0_42] : memref<1x16x128xf32, #tpu.memory_space<vmem>>, vector<1x16x128xf32>
    %157 = vector.shape_cast %156 : vector<1x16x128xf32> to vector<16x128xf32>
    %158 = vector.shape_cast %155 : vector<16x128xf32> to vector<1x16x128xf32>
    tpu.vector_store %arg6[%c0_40, %c0_41, %c0_42], %158 {strides = array<i32>} : memref<1x16x128xf32, #tpu.memory_space<vmem>>, vector<1x16x128xf32>,
    return
  }
  func.func @transform_0(%arg0: i32) -> (i32, i32, i32) {
    %c0_i32 = arith.constant 0 : i32
    %c0_i32_0 = arith.constant 0 : i32
    %c0_i32_1 = arith.constant 0 : i32
    return %arg0, %c0_i32, %c0_i32_0 : i32, i32, i32
  }
  func.func @transform_1(%arg0: i32) -> (i32, i32) {
    %c0_i32 = arith.constant 0 : i32
    %c0_i32_0 = arith.constant 0 : i32
    %c0_i32_1 = arith.constant 0 : i32
    return %c0_i32, %c0_i32_0 : i32, i32
  }
  func.func @transform_2(%arg0: i32) -> (i32, i32) {
    %c0_i32 = arith.constant 0 : i32
    %c0_i32_0 = arith.constant 0 : i32
    %c0_i32_1 = arith.constant 0 : i32
    return %c0_i32, %c0_i32_0 : i32, i32
  }
  func.func @transform_3(%arg0: i32) -> (i32, i32) {
    %c0_i32 = arith.constant 0 : i32
    %c0_i32_0 = arith.constant 0 : i32
    %c0_i32_1 = arith.constant 0 : i32
    return %c0_i32, %c0_i32_0 : i32, i32
  }
  func.func @transform_4(%arg0: i32) -> (i32, i32) {
    %c0_i32 = arith.constant 0 : i32
    %c0_i32_0 = arith.constant 0 : i32
    %c0_i32_1 = arith.constant 0 : i32
    return %c0_i32, %c0_i32_0 : i32, i32
  }
  func.func @transform_5(%arg0: i32) -> (i32, i32, i32) {
    %c0_i32 = arith.constant 0 : i32
    %c0_i32_0 = arith.constant 0 : i32
    %c0_i32_1 = arith.constant 0 : i32
    return %arg0, %c0_i32, %c0_i32_0 : i32, i32, i32
  }
}

</mosaic_0001>

<llo_original>
// kernel: tpu_custom_call.1
$region0: #{tpu_custom_call.1}
  #allocation0 [shape = 'u32[]', space=smem, size = 0x4, offset = 0x4, fixed_abs, tag = 'smem constant byte address 0x4 - core index']
  #allocation1 [shape = 'u32[144,128]{1,0:T(1,128)}', space=vmem, size = 0x12000, scoped, tag = 'internal scratch']
  %s0 = inlined_call_operand.hbm [shape: f32[2,16,128], index: 0, kind: input, shape index: {}]
  %s1 = inlined_call_operand.hbm [shape: bf16[384,512], index: 1, kind: input, shape index: {}]
  %s2 = inlined_call_operand.vmem [shape: f32[1,512], index: 2, kind: input, shape index: {}]
  %s3 = inlined_call_operand.hbm [shape: bf16[512,128], index: 3, kind: input, shape index: {}]
  %s4 = inlined_call_operand.hbm [shape: bf16[128,128], index: 4, kind: input, shape index: {}]
  %s5 = inlined_call_operand.hbm [shape: f32[2,16,128], index: 5, kind: output, shape index: {}]
  %s6 = sld [smem:[#allocation0]]
  $region69: #{tpu_custom_call.1} parent=0
    _
  %s8 = ssub.s32 1, %s6
  %s9 = scalar_select 0, %s8, %s6
  $region1: #{tpu_custom_call.1} parent=0
    #allocation2 [shape = 'u8[16384]{0}', space=vmem, size = 0x4000, scoped, tag = 'input window, operand 0']
    #allocation3 [shape = 's32[2]{0}', space=sflag, size = 0x8, scoped, tag = 'scoped memory for tpu_custom_call.1']
    #allocation4 [shape = 's32[2]{0}', space=sflag, size = 0x8, scoped, tag = 'scoped memory for tpu_custom_call.1']
    #allocation5 [shape = 'u8[393216]{0}', space=vmem, size = 0x60000, scoped, tag = 'input window, operand 1, single buffered']
    #allocation6 [shape = 's32[1]{0}', space=sflag, size = 0x4, scoped, tag = 'scoped memory for tpu_custom_call.1']
    #allocation7 [shape = 'u8[131072]{0}', space=vmem, size = 0x20000, scoped, tag = 'input window, operand 3, single buffered']
    #allocation8 [shape = 'u8[32768]{0}', space=vmem, size = 0x8000, scoped, tag = 'input window, operand 4, single buffered']
    #allocation9 [shape = 's32[1]{0}', space=sflag, size = 0x4, scoped, tag = 'scoped memory for tpu_custom_call.1']
    #allocation10 [shape = 'u8[16384]{0}', space=vmem, size = 0x4000, scoped, tag = 'output window, operand 0']
    %10 = vsyncpa [#allocation3], 0
    %s11 = scalar_lea.sflag [#allocation3], 1
    %12 = vsyncpa %s11, 0
    %13 = vsyncpa [#allocation6], 0
    %14 = vsyncpa [#allocation9], 0
    %15 = vsyncpa [#allocation4], 0
    %s16 = scalar_lea.sflag [#allocation4], 1
    %17 = vsyncpa %s16, 0
    loop: start=0, step=1, limit=4
    $region2: #{tpu_custom_call.1} parent=1 // loop_pre_header
      _
    $region3: #{tpu_custom_call.1} parent=1 // loop_header
      %s19 = sphi 0, %s23
      %p20 = scmp.ge.s32.totalorder %s19, 4
      %s29 = sphi 0, %s31
      %s32 = sphi 0, %s29
      %s33 = sphi 0, %s32
      %s49 = sphi 0, %s33
      %s53 = sphi 0, %s53
      %s55 = sphi 0, %s53
      %s56 = sphi 0, %s55
      %s70 = sphi 0, %s56
      %s74 = sphi 0, %s74
      %s76 = sphi 0, %s74
      %s77 = sphi 0, %s76
      %s91 = sphi 0, %s77
      %s95 = sphi 0, %s95
      %s97 = sphi 0, %s95
      %s98 = sphi 0, %s97
      %s112 = sphi 0, %s98
      %s116 = sphi 0, %s116
      %s118 = sphi 0, %s116
      %s119 = sphi 0, %s118
      %s133 = sphi 0, %s119
      %s139 = sphi 0, %s141
      %s142 = sphi 0, %s139
      %s143 = sphi 0, %s142
      %s159 = sphi 0, %s143
    $region4: #{tpu_custom_call.1} parent=1 // loop_header_branch
      %22 = sbr.rel (%p20) target = $region8
    $region5: #{tpu_custom_call.1} parent=1 // loop_body
      %s24 = ssub.s32 %s19, 1
      %s25 = ssub.s32 %s19, 2
      %s26 = sadd.s32 %s19, 1
      %s27 = ssub.s32 %s19, %s26
      %p28 = scmp.eq.s32.totalorder %s27, 0
      %s30 = sadd.s32 %s29, 1
      %s31 = scalar_select %p28, %s29, %s30
      %p34 = pneg %p28
      %p35 = scmp.eq.s32.totalorder %s19, 1
      %p36 = por %p34, %p35
      %p37 = scmp.ne.s32.totalorder %s29, %s32
      %p38 = scmp.eq.s32.totalorder %s19, 0
      %p39 = por %p37, %p38
      %p40 = scmp.ne.s32.totalorder %s29, %s32
      %p41 = scmp.eq.s32.totalorder %s24, 1
      %p42 = por %p40, %p41
      %p43 = scmp.ne.s32.totalorder %s32, %s33
      %p44 = scmp.eq.s32.totalorder %s24, 0
      %p45 = por %p43, %p44
      %p46 = scmp.ne.s32.totalorder %s32, %s33
      %p47 = scmp.eq.s32.totalorder %s25, 1
      %p48 = por %p46, %p47
      %p50 = scmp.ne.s32.totalorder %s33, %s49
      %p51 = scmp.eq.s32.totalorder %s25, 0
      %p52 = por %p50, %p51
      %s54 = sadd.s32 %s53, 1
      %p57 = scmp.eq.s32.totalorder %s19, 1
      %p58 = scmp.ne.s32.totalorder %s53, %s55
      %p59 = scmp.eq.s32.totalorder %s19, 0
      %p60 = por %p58, %p59
      %p61 = scmp.ne.s32.totalorder %s53, %s55
      %p62 = scmp.eq.s32.totalorder %s24, 1
      %p63 = por %p61, %p62
      %p64 = scmp.ne.s32.totalorder %s55, %s56
      %p65 = scmp.eq.s32.totalorder %s24, 0
      %p66 = por %p64, %p65
      %p67 = scmp.ne.s32.totalorder %s55, %s56
      %p68 = scmp.eq.s32.totalorder %s25, 1
      %p69 = por %p67, %p68
      %p71 = scmp.ne.s32.totalorder %s56, %s70
      %p72 = scmp.eq.s32.totalorder %s25, 0
      %p73 = por %p71, %p72
      %s75 = sadd.s32 %s74, 1
      %p78 = scmp.eq.s32.totalorder %s19, 1
      %p79 = scmp.ne.s32.totalorder %s74, %s76
      %p80 = scmp.eq.s32.totalorder %s19, 0
      %p81 = por %p79, %p80
      %p82 = scmp.ne.s32.totalorder %s74, %s76
      %p83 = scmp.eq.s32.totalorder %s24, 1
      %p84 = por %p82, %p83
      %p85 = scmp.ne.s32.totalorder %s76, %s77
      %p86 = scmp.eq.s32.totalorder %s24, 0
      %p87 = por %p85, %p86
      %p88 = scmp.ne.s32.totalorder %s76, %s77
      %p89 = scmp.eq.s32.totalorder %s25, 1
      %p90 = por %p88, %p89
      %p92 = scmp.ne.s32.totalorder %s77, %s91
      %p93 = scmp.eq.s32.totalorder %s25, 0
      %p94 = por %p92, %p93
      %s96 = sadd.s32 %s95, 1
      %p99 = scmp.eq.s32.totalorder %s19, 1
      %p100 = scmp.ne.s32.totalorder %s95, %s97
      %p101 = scmp.eq.s32.totalorder %s19, 0
      %p102 = por %p100, %p101
      %p103 = scmp.ne.s32.totalorder %s95, %s97
      %p104 = scmp.eq.s32.totalorder %s24, 1
      %p105 = por %p103, %p104
      %p106 = scmp.ne.s32.totalorder %s97, %s98
      %p107 = scmp.eq.s32.totalorder %s24, 0
      %p108 = por %p106, %p107
      %p109 = scmp.ne.s32.totalorder %s97, %s98
      %p110 = scmp.eq.s32.totalorder %s25, 1
      %p111 = por %p109, %p110
      %p113 = scmp.ne.s32.totalorder %s98, %s112
      %p114 = scmp.eq.s32.totalorder %s25, 0
      %p115 = por %p113, %p114
      %s117 = sadd.s32 %s116, 1
      %p120 = scmp.eq.s32.totalorder %s19, 1
      %p121 = scmp.ne.s32.totalorder %s116, %s118
      %p122 = scmp.eq.s32.totalorder %s19, 0
      %p123 = por %p121, %p122
      %p124 = scmp.ne.s32.totalorder %s116, %s118
      %p125 = scmp.eq.s32.totalorder %s24, 1
      %p126 = por %p124, %p125
      %p127 = scmp.ne.s32.totalorder %s118, %s119
      %p128 = scmp.eq.s32.totalorder %s24, 0
      %p129 = por %p127, %p128
      %p130 = scmp.ne.s32.totalorder %s118, %s119
      %p131 = scmp.eq.s32.totalorder %s25, 1
      %p132 = por %p130, %p131
      %p134 = scmp.ne.s32.totalorder %s119, %s133
      %p135 = scmp.eq.s32.totalorder %s25, 0
      %p136 = por %p134, %p135
      %s137 = ssub.s32 %s19, %s26
      %p138 = scmp.eq.s32.totalorder %s137, 0
      %s140 = sadd.s32 %s139, 1
      %s141 = scalar_select %p138, %s139, %s140
      %p144 = pneg %p138
      %p145 = scmp.eq.s32.totalorder %s19, 1
      %p146 = por %p144, %p145
      %p147 = scmp.ne.s32.totalorder %s139, %s142
      %p148 = scmp.eq.s32.totalorder %s19, 0
      %p149 = por %p147, %p148
      %p150 = scmp.ne.s32.totalorder %s139, %s142
      %p151 = scmp.eq.s32.totalorder %s24, 1
      %p152 = por %p150, %p151
      %p153 = scmp.ne.s32.totalorder %s142, %s143
      %p154 = scmp.eq.s32.totalorder %s24, 0
      %p155 = por %p153, %p154
      %p156 = scmp.ne.s32.totalorder %s142, %s143
      %p157 = scmp.eq.s32.totalorder %s25, 1
      %p158 = por %p156, %p157
      %p160 = scmp.ne.s32.totalorder %s143, %s159
      %p161 = scmp.eq.s32.totalorder %s25, 0
      %p162 = por %p160, %p161
      %p163 = scmp.le.s32.totalorder 1, %s19
      %p164 = scmp.lt.s32.totalorder %s19, 3
      %p165 = pnand %p163, %p164
      %p166 = pneg %p165
      // Predicated region
      $region9: #{tpu_custom_call.1} parent=5 // pred_check
        _
      $region10: #{tpu_custom_call.1} parent=5 // pred_check_branch
        %168 = sbr.rel (%p165) target = $region12
      $region11: #{tpu_custom_call.1} parent=5 // pred_region
        %s169 = ssub.s32 %s19, 1
        // Predicated region
        $region13: #{tpu_custom_call.1} parent=11 // pred_check
          %p170 = pneg %p66
        $region14: #{tpu_custom_call.1} parent=11 // pred_check_branch
          %172 = sbr.rel (%p170) target = $region16
        $region15: #{tpu_custom_call.1} parent=11 // pred_region
          %s174 = ssub.s32 12288, 12288
          %175 = vsyncadd [#allocation6], %s174
          %s176 = sshll.u32 [#allocation5], 4
          %s177 = int_to_ptr.vmem [resolvable:$true] %s176
          %182 = dma.hbm_to_vmem [thread:$0]  %s1, 12288, %s177, [#allocation6], 256, 256, 16
        $region16: #{tpu_custom_call.1} parent=11 // pred_fallthru
          _
        // Predicated region
        $region17: #{tpu_custom_call.1} parent=11 // pred_check
          %p183 = pneg %p87
        $region18: #{tpu_custom_call.1} parent=11 // pred_check_branch
          %185 = sbr.rel (%p183) target = $region20
        $region19: #{tpu_custom_call.1} parent=11 // pred_region
          _
        $region20: #{tpu_custom_call.1} parent=11 // pred_fallthru
          _
        // Predicated region
        $region21: #{tpu_custom_call.1} parent=11 // pred_check
          %p186 = pneg %p108
        $region22: #{tpu_custom_call.1} parent=11 // pred_check_branch
          %188 = sbr.rel (%p186) target = $region24
        $region23: #{tpu_custom_call.1} parent=11 // pred_region
          %s190 = ssub.s32 4096, 4096
          %191 = vsyncadd [#allocation6], %s190
          %s192 = sshll.u32 [#allocation7], 4
          %s193 = int_to_ptr.vmem [resolvable:$true] %s192
          %198 = dma.hbm_to_vmem [thread:$0]  %s3, 4096, %s193, [#allocation6], 64, 64, 4
        $region24: #{tpu_custom_call.1} parent=11 // pred_fallthru
          _
        // Predicated region
        $region25: #{tpu_custom_call.1} parent=11 // pred_check
          %p199 = pneg %p129
        $region26: #{tpu_custom_call.1} parent=11 // pred_check_branch
          %201 = sbr.rel (%p199) target = $region28
        $region27: #{tpu_custom_call.1} parent=11 // pred_region
          %s203 = ssub.s32 1024, 1024
          %204 = vsyncadd [#allocation9], %s203
          %s205 = sshll.u32 [#allocation8], 4
          %s206 = int_to_ptr.vmem [resolvable:$true] %s205
          %211 = dma.hbm_to_vmem [thread:$0]  %s4, 1024, %s206, [#allocation9], 64, 64, 4
        $region28: #{tpu_custom_call.1} parent=11 // pred_fallthru
          _
      $region12: #{tpu_custom_call.1} parent=5 // pred_fallthru
        _
      %p212 = scmp.lt.s32.totalorder %s19, 2
      // Predicated region
      $region29: #{tpu_custom_call.1} parent=5 // pred_check
        %p213 = pneg %p212
      $region30: #{tpu_custom_call.1} parent=5 // pred_check_branch
        %215 = sbr.rel (%p213) target = $region32
      $region31: #{tpu_custom_call.1} parent=5 // pred_region
        // Predicated region
        $region33: #{tpu_custom_call.1} parent=31 // pred_check
          %p216 = pneg %p39
        $region34: #{tpu_custom_call.1} parent=31 // pred_check_branch
          %218 = sbr.rel (%p216) target = $region36
        $region35: #{tpu_custom_call.1} parent=31 // pred_region
          %s219 = sand.u32 %s29, 1
          %s220 = scalar_lea.sflag [#allocation3], %s219
          %s221 = sand.u32 %s29, 1
          %s222 = smul.addr %s221, 16
          %s223 = scalar_lea.vmem [#allocation2], %s222
          %s225 = ssub.s32 256, 256
          %226 = vsyncadd %s220, %s225
          %s227 = smul.addr %s19, 2
          %s228 = smul.addr %s227, 128
          %s229 = scalar_lea.hbm %s0, %s228
          %s230 = sshll.u32 %s223, 4
          %s231 = int_to_ptr.vmem [resolvable:$true] %s230
          %236 = dma.hbm_to_vmem [thread:$0]  %s229, 256, %s231, %s220, 128, 128, 8
        $region36: #{tpu_custom_call.1} parent=31 // pred_fallthru
          _
      $region32: #{tpu_custom_call.1} parent=5 // pred_fallthru
        _
      %p237 = scmp.le.s32.totalorder 1, %s19
      %p238 = scmp.lt.s32.totalorder %s19, 3
      %p239 = pnand %p237, %p238
      %p240 = pneg %p239
      // Predicated region
      $region37: #{tpu_custom_call.1} parent=5 // pred_check
        _
      $region38: #{tpu_custom_call.1} parent=5 // pred_check_branch
        %242 = sbr.rel (%p239) target = $region40
      $region39: #{tpu_custom_call.1} parent=5 // pred_region
        %s243 = ssub.s32 %s19, 1
        %s244 = sand.u32 %s32, 1
        %s245 = scalar_lea.sflag [#allocation3], %s244
        %s246 = sand.u32 %s32, 1
        %s247 = smul.addr %s246, 16
        %s248 = scalar_lea.vmem [#allocation2], %s247
        // Predicated region
        $region41: #{tpu_custom_call.1} parent=39 // pred_check
          %p249 = pneg %p45
        $region42: #{tpu_custom_call.1} parent=39 // pred_check_branch
          %251 = sbr.rel (%p249) target = $region44
        $region43: #{tpu_custom_call.1} parent=39 // pred_region
          %252 = dma.done %s245, 256
        $region44: #{tpu_custom_call.1} parent=39 // pred_fallthru
          _
        // Predicated region
        $region45: #{tpu_custom_call.1} parent=39 // pred_check
          %p253 = pneg %p66
        $region46: #{tpu_custom_call.1} parent=39 // pred_check_branch
          %255 = sbr.rel (%p253) target = $region48
        $region47: #{tpu_custom_call.1} parent=39 // pred_region
          %256 = dma.done [#allocation6], 12288
        $region48: #{tpu_custom_call.1} parent=39 // pred_fallthru
          _
        // Predicated region
        $region49: #{tpu_custom_call.1} parent=39 // pred_check
          %p257 = pneg %p108
        $region50: #{tpu_custom_call.1} parent=39 // pred_check_branch
          %259 = sbr.rel (%p257) target = $region52
        $region51: #{tpu_custom_call.1} parent=39 // pred_region
          %260 = dma.done [#allocation6], 4096
        $region52: #{tpu_custom_call.1} parent=39 // pred_fallthru
          _
        // Predicated region
        $region53: #{tpu_custom_call.1} parent=39 // pred_check
          %p261 = pneg %p129
        $region54: #{tpu_custom_call.1} parent=39 // pred_check_branch
          %263 = sbr.rel (%p261) target = $region56
        $region55: #{tpu_custom_call.1} parent=39 // pred_region
          %264 = dma.done [#allocation9], 1024
        $region56: #{tpu_custom_call.1} parent=39 // pred_fallthru
          _
        %s265 = sand.u32 %s32, 1
        %s266 = scalar_lea.sflag [#allocation3], %s265
        %s267 = sand.u32 %s32, 1
        %s268 = smul.addr %s267, 16
        %s269 = scalar_lea.vmem [#allocation2], %s268
        %p270 = pneg %p45
        %p271 = pneg %p42
        %p272 = pneg %p66
        %p273 = pneg %p63
        %p274 = pneg %p87
        %p275 = pneg %p84
        %p276 = pneg %p108
        %p277 = pneg %p105
        %p278 = pneg %p129
        %p279 = pneg %p126
        %p280 = pneg %p155
        %p281 = pneg %p152
        %s282 = sand.u32 %s142, 1
        %s283 = scalar_lea.sflag [#allocation4], %s282
        %s284 = sand.u32 %s142, 1
        %s285 = smul.addr %s284, 16
        %s286 = scalar_lea.vmem [#allocation10], %s285
        %v288 = vld [vmem:[%s248] sm:$0xff]
        %v289 = vld [vmem:[%s248 + $0x8] sm:$0xff]
        %v290 = vld [vmem:[%s2] sm:$0xf]
        %v292 = vlaneseq
        %v293 = vshrl.u32 %v292, 7
        %v294 = vsub.s32 0, %v293
        %v295 = vrot.slane %v290, %v294
        %v296 = vlaneseq
        %v297 = vshrl.u32 %v296, 7
        %v298 = vsub.s32 1, %v297
        %v299 = vrot.slane %v290, %v298
        %v300 = vlaneseq
        %v301 = vshrl.u32 %v300, 7
        %v302 = vsub.s32 2, %v301
        %v303 = vrot.slane %v290, %v302
        %v304 = vlaneseq
        %v305 = vshrl.u32 %v304, 7
        %v306 = vsub.s32 3, %v305
        %v307 = vrot.slane %v290, %v306
        %v312 = vlaneseq
        %v313 = vshrl.u32 %v312, 7
        %v314 = vadd.s32 %v313, 8
        %vm315 = vcmp.lt.s32.totalorder %v313, 0
        %v316 = vsub.s32 0, %v313
        %v317 = vsel %vm315, %v316, %v313
        %v318 = vshrl.u32 %v317, 4
        %v319 = vand.u32 %v317, 15
        %v320 = vsub.s32 0, %v319
        %v321 = vsel %vm315, %v320, %v319
        %vm322 = vcmp.lt.s32.totalorder %v314, 0
        %v323 = vsub.s32 0, %v314
        %v324 = vsel %vm322, %v323, %v314
        %v325 = vshrl.u32 %v324, 4
        %v326 = vand.u32 %v324, 15
        %v327 = vsub.s32 0, %v326
        %v328 = vsel %vm322, %v327, %v326
        %vm329 = vcmp.ne.s32.totalorder %v321, 0
        %vm330 = vcmp.ne.s32.totalorder %v328, 0
        %vm331 = vcmp.lt.s32.totalorder %v321, 0
        %vm332 = vcmp.lt.s32.totalorder %v328, 0
        %vm333 = vmand %vm331, %vm329
        %vm334 = vmand %vm332, %vm330
        %v335 = vadd.s32 %v321, 16
        %v336 = vadd.s32 %v328, 16
        %v337 = vsel %vm333, %v335, %v321
        %v338 = vsel %vm334, %v336, %v328
        %vm339 = vcmp.ne.s32.totalorder %v337, 0
        %vm340 = vcmp.ne.s32.totalorder %v338, 0
        %v341 = vsel %vm339, 1, 0
        %v342 = vsel %vm340, 1, 0
        %v343 = vcvt.s32.f32 %v341
        %v344 = vcvt.s32.f32 %v342
        %vm345 = vcmp.ne.s32.totalorder %v337, 15
        %vm346 = vcmp.ne.s32.totalorder %v338, 15
        %v347 = vsel %vm345, 1, 0
        %v348 = vsel %vm346, 1, 0
        %v349 = vcvt.s32.f32 %v347
        %v350 = vcvt.s32.f32 %v348
        %v351 = vrot.slane %v288, 7
        %v352 = vrot.slane %v289, 7
        %vm353 = vcmp.lt.s32.totalorder %v313, 1
        %v354 = vsel %vm353, %v351, %v352
        %v355 = vsel %vm353, %v352, %v351
        %v356 = vmul.f32 %v355, %v343
        %v357 = vmul.f32 %v354, %v344
        %v358 = vrot.slane %v288, 1
        %v359 = vrot.slane %v289, 1
        %vm360 = vcmp.lt.s32.totalorder %v313, 7
        %v361 = vsel %vm360, %v358, %v359
        %v362 = vsel %vm360, %v359, %v358
        %v363 = vmul.f32 %v361, %v349
        %v364 = vmul.f32 %v362, %v350
        %v365 = vpack.c.bf16 %v357, %v356
        %v366 = vpack.c.bf16 %v289, %v288
        %v367 = vpack.c.bf16 %v364, %v363
        %v368 = vld [vmem:[#allocation5] sm:$0xff]
        %v369 = vld [vmem:[#allocation5 + $0x8] sm:$0xff]
        %v370 = vld [vmem:[#allocation5 + $0x10] sm:$0xff]
        %v371 = vld [vmem:[#allocation5 + $0x18] sm:$0xff]
        %v372 = vld [vmem:[#allocation5 + $0x20] sm:$0xff]
        %v373 = vld [vmem:[#allocation5 + $0x28] sm:$0xff]
        %v374 = vld [vmem:[#allocation5 + $0x30] sm:$0xff]
        %v375 = vld [vmem:[#allocation5 + $0x38] sm:$0xff]
        %v376 = vld [vmem:[#allocation5 + $0x40] sm:$0xff]
        %v377 = vld [vmem:[#allocation5 + $0x48] sm:$0xff]
        %v378 = vld [vmem:[#allocation5 + $0x50] sm:$0xff]
        %v379 = vld [vmem:[#allocation5 + $0x58] sm:$0xff]
        %v380 = vld [vmem:[#allocation5 + $0x60] sm:$0xff]
        %v381 = vld [vmem:[#allocation5 + $0x68] sm:$0xff]
        %v382 = vld [vmem:[#allocation5 + $0x70] sm:$0xff]
        %v383 = vld [vmem:[#allocation5 + $0x78] sm:$0xff]
        %v384 = vld [vmem:[#allocation5 + $0x80] sm:$0xff]
        %v385 = vld [vmem:[#allocation5 + $0x88] sm:$0xff]
        %v386 = vld [vmem:[#allocation5 + $0x90] sm:$0xff]
        %v387 = vld [vmem:[#allocation5 + $0x98] sm:$0xff]
        %v388 = vld [vmem:[#allocation5 + $0xa0] sm:$0xff]
        %v389 = vld [vmem:[#allocation5 + $0xa8] sm:$0xff]
        %v390 = vld [vmem:[#allocation5 + $0xb0] sm:$0xff]
        %v391 = vld [vmem:[#allocation5 + $0xb8] sm:$0xff]
        %v392 = vld [vmem:[#allocation5 + $0xc0] sm:$0xff]
        %v393 = vld [vmem:[#allocation5 + $0xc8] sm:$0xff]
        %v394 = vld [vmem:[#allocation5 + $0xd0] sm:$0xff]
        %v395 = vld [vmem:[#allocation5 + $0xd8] sm:$0xff]
        %v396 = vld [vmem:[#allocation5 + $0xe0] sm:$0xff]
        %v397 = vld [vmem:[#allocation5 + $0xe8] sm:$0xff]
        %v398 = vld [vmem:[#allocation5 + $0xf0] sm:$0xff]
        %v399 = vld [vmem:[#allocation5 + $0xf8] sm:$0xff]
        %v400 = vld [vmem:[#allocation5 + $0x100] sm:$0xff]
        %v401 = vld [vmem:[#allocation5 + $0x108] sm:$0xff]
        %v402 = vld [vmem:[#allocation5 + $0x110] sm:$0xff]
        %v403 = vld [vmem:[#allocation5 + $0x118] sm:$0xff]
        %v404 = vld [vmem:[#allocation5 + $0x120] sm:$0xff]
        %v405 = vld [vmem:[#allocation5 + $0x128] sm:$0xff]
        %v406 = vld [vmem:[#allocation5 + $0x130] sm:$0xff]
        %v407 = vld [vmem:[#allocation5 + $0x138] sm:$0xff]
        %v408 = vld [vmem:[#allocation5 + $0x140] sm:$0xff]
        %v409 = vld [vmem:[#allocation5 + $0x148] sm:$0xff]
        %v410 = vld [vmem:[#allocation5 + $0x150] sm:$0xff]
        %v411 = vld [vmem:[#allocation5 + $0x158] sm:$0xff]
        %v412 = vld [vmem:[#allocation5 + $0x160] sm:$0xff]
        %v413 = vld [vmem:[#allocation5 + $0x168] sm:$0xff]
        %v414 = vld [vmem:[#allocation5 + $0x170] sm:$0xff]
        %v415 = vld [vmem:[#allocation5 + $0x178] sm:$0xff]
        %v416 = vld [vmem:[#allocation5 + $0x180] sm:$0xff]
        %v417 = vld [vmem:[#allocation5 + $0x188] sm:$0xff]
        %v418 = vld [vmem:[#allocation5 + $0x190] sm:$0xff]
        %v419 = vld [vmem:[#allocation5 + $0x198] sm:$0xff]
        %v420 = vld [vmem:[#allocation5 + $0x1a0] sm:$0xff]
        %v421 = vld [vmem:[#allocation5 + $0x1a8] sm:$0xff]
        %v422 = vld [vmem:[#allocation5 + $0x1b0] sm:$0xff]
        %v423 = vld [vmem:[#allocation5 + $0x1b8] sm:$0xff]
        %v424 = vld [vmem:[#allocation5 + $0x1c0] sm:$0xff]
        %v425 = vld [vmem:[#allocation5 + $0x1c8] sm:$0xff]
        %v426 = vld [vmem:[#allocation5 + $0x1d0] sm:$0xff]
        %v427 = vld [vmem:[#allocation5 + $0x1d8] sm:$0xff]
        %v428 = vld [vmem:[#allocation5 + $0x1e0] sm:$0xff]
        %v429 = vld [vmem:[#allocation5 + $0x1e8] sm:$0xff]
        %v430 = vld [vmem:[#allocation5 + $0x1f0] sm:$0xff]
        %v431 = vld [vmem:[#allocation5 + $0x1f8] sm:$0xff]
        %v432 = vld [vmem:[#allocation5 + $0x200] sm:$0xff]
        %v433 = vld [vmem:[#allocation5 + $0x208] sm:$0xff]
        %v434 = vld [vmem:[#allocation5 + $0x210] sm:$0xff]
        %v435 = vld [vmem:[#allocation5 + $0x218] sm:$0xff]
        %v436 = vld [vmem:[#allocation5 + $0x220] sm:$0xff]
        %v437 = vld [vmem:[#allocation5 + $0x228] sm:$0xff]
        %v438 = vld [vmem:[#allocation5 + $0x230] sm:$0xff]
        %v439 = vld [vmem:[#allocation5 + $0x238] sm:$0xff]
        %v440 = vld [vmem:[#allocation5 + $0x240] sm:$0xff]
        %v441 = vld [vmem:[#allocation5 + $0x248] sm:$0xff]
        %v442 = vld [vmem:[#allocation5 + $0x250] sm:$0xff]
        %v443 = vld [vmem:[#allocation5 + $0x258] sm:$0xff]
        %v444 = vld [vmem:[#allocation5 + $0x260] sm:$0xff]
        %v445 = vld [vmem:[#allocation5 + $0x268] sm:$0xff]
        %v446 = vld [vmem:[#allocation5 + $0x270] sm:$0xff]
        %v447 = vld [vmem:[#allocation5 + $0x278] sm:$0xff]
        %v448 = vld [vmem:[#allocation5 + $0x280] sm:$0xff]
        %v449 = vld [vmem:[#allocation5 + $0x288] sm:$0xff]
        %v450 = vld [vmem:[#allocation5 + $0x290] sm:$0xff]
        %v451 = vld [vmem:[#allocation5 + $0x298] sm:$0xff]
        %v452 = vld [vmem:[#allocation5 + $0x2a0] sm:$0xff]
        %v453 = vld [vmem:[#allocation5 + $0x2a8] sm:$0xff]
        %v454 = vld [vmem:[#allocation5 + $0x2b0] sm:$0xff]
        %v455 = vld [vmem:[#allocation5 + $0x2b8] sm:$0xff]
        %v456 = vld [vmem:[#allocation5 + $0x2c0] sm:$0xff]
        %v457 = vld [vmem:[#allocation5 + $0x2c8] sm:$0xff]
        %v458 = vld [vmem:[#allocation5 + $0x2d0] sm:$0xff]
        %v459 = vld [vmem:[#allocation5 + $0x2d8] sm:$0xff]
        %v460 = vld [vmem:[#allocation5 + $0x2e0] sm:$0xff]
        %v461 = vld [vmem:[#allocation5 + $0x2e8] sm:$0xff]
        %v462 = vld [vmem:[#allocation5 + $0x2f0] sm:$0xff]
        %v463 = vld [vmem:[#allocation5 + $0x2f8] sm:$0xff]
        %v560 = vunpack.c.l.b16 %v368
        %v561 = vunpack.c.h.b16 %v368
        %v562 = vunpack.c.l.b16 %v369
        %v563 = vunpack.c.h.b16 %v369
        %v564 = vunpack.c.l.b16 %v370
        %v565 = vunpack.c.h.b16 %v370
        %v566 = vunpack.c.l.b16 %v371
        %v567 = vunpack.c.h.b16 %v371
        %v568 = vunpack.c.l.b16 %v372
        %v569 = vunpack.c.h.b16 %v372
        %v570 = vunpack.c.l.b16 %v373
        %v571 = vunpack.c.h.b16 %v373
        %v572 = vunpack.c.l.b16 %v374
        %v573 = vunpack.c.h.b16 %v374
        %v574 = vunpack.c.l.b16 %v375
        %v575 = vunpack.c.h.b16 %v375
        %v576 = vunpack.c.l.b16 %v376
        %v577 = vunpack.c.h.b16 %v376
        %v578 = vunpack.c.l.b16 %v377
        %v579 = vunpack.c.h.b16 %v377
        %v580 = vunpack.c.l.b16 %v378
        %v581 = vunpack.c.h.b16 %v378
        %v582 = vunpack.c.l.b16 %v379
        %v583 = vunpack.c.h.b16 %v379
        %v584 = vunpack.c.l.b16 %v380
        %v585 = vunpack.c.h.b16 %v380
        %v586 = vunpack.c.l.b16 %v381
        %v587 = vunpack.c.h.b16 %v381
        %v588 = vunpack.c.l.b16 %v382
        %v589 = vunpack.c.h.b16 %v382
        %v590 = vunpack.c.l.b16 %v383
        %v591 = vunpack.c.h.b16 %v383
        %v592 = vunpack.c.l.b16 %v384
        %v593 = vunpack.c.h.b16 %v384
        %v594 = vunpack.c.l.b16 %v385
        %v595 = vunpack.c.h.b16 %v385
        %v596 = vunpack.c.l.b16 %v386
        %v597 = vunpack.c.h.b16 %v386
        %v598 = vunpack.c.l.b16 %v387
        %v599 = vunpack.c.h.b16 %v387
        %v600 = vunpack.c.l.b16 %v388
        %v601 = vunpack.c.h.b16 %v388
        %v602 = vunpack.c.l.b16 %v389
        %v603 = vunpack.c.h.b16 %v389
        %v604 = vunpack.c.l.b16 %v390
        %v605 = vunpack.c.h.b16 %v390
        %v606 = vunpack.c.l.b16 %v391
        %v607 = vunpack.c.h.b16 %v391
        %v608 = vunpack.c.l.b16 %v392
        %v609 = vunpack.c.h.b16 %v392
        %v610 = vunpack.c.l.b16 %v393
        %v611 = vunpack.c.h.b16 %v393
        %v612 = vunpack.c.l.b16 %v394
        %v613 = vunpack.c.h.b16 %v394
        %v614 = vunpack.c.l.b16 %v395
        %v615 = vunpack.c.h.b16 %v395
        %v616 = vunpack.c.l.b16 %v396
        %v617 = vunpack.c.h.b16 %v396
        %v618 = vunpack.c.l.b16 %v397
        %v619 = vunpack.c.h.b16 %v397
        %v620 = vunpack.c.l.b16 %v398
        %v621 = vunpack.c.h.b16 %v398
        %v622 = vunpack.c.l.b16 %v399
        %v623 = vunpack.c.h.b16 %v399
        %v624 = vunpack.c.l.b16 %v400
        %v625 = vunpack.c.h.b16 %v400
        %v626 = vunpack.c.l.b16 %v401
        %v627 = vunpack.c.h.b16 %v401
        %v628 = vunpack.c.l.b16 %v402
        %v629 = vunpack.c.h.b16 %v402
        %v630 = vunpack.c.l.b16 %v403
        %v631 = vunpack.c.h.b16 %v403
        %v632 = vunpack.c.l.b16 %v404
        %v633 = vunpack.c.h.b16 %v404
        %v634 = vunpack.c.l.b16 %v405
        %v635 = vunpack.c.h.b16 %v405
        %v636 = vunpack.c.l.b16 %v406
        %v637 = vunpack.c.h.b16 %v406
        %v638 = vunpack.c.l.b16 %v407
        %v639 = vunpack.c.h.b16 %v407
        %v640 = vunpack.c.l.b16 %v408
        %v641 = vunpack.c.h.b16 %v408
        %v642 = vunpack.c.l.b16 %v409
        %v643 = vunpack.c.h.b16 %v409
        %v644 = vunpack.c.l.b16 %v410
        %v645 = vunpack.c.h.b16 %v410
        %v646 = vunpack.c.l.b16 %v411
        %v647 = vunpack.c.h.b16 %v411
        %v648 = vunpack.c.l.b16 %v412
        %v649 = vunpack.c.h.b16 %v412
        %v650 = vunpack.c.l.b16 %v413
        %v651 = vunpack.c.h.b16 %v413
        %v652 = vunpack.c.l.b16 %v414
        %v653 = vunpack.c.h.b16 %v414
        %v654 = vunpack.c.l.b16 %v415
        %v655 = vunpack.c.h.b16 %v415
        %v656 = vunpack.c.l.b16 %v416
        %v657 = vunpack.c.h.b16 %v416
        %v658 = vunpack.c.l.b16 %v417
        %v659 = vunpack.c.h.b16 %v417
        %v660 = vunpack.c.l.b16 %v418
        %v661 = vunpack.c.h.b16 %v418
        %v662 = vunpack.c.l.b16 %v419
        %v663 = vunpack.c.h.b16 %v419
        %v664 = vunpack.c.l.b16 %v420
        %v665 = vunpack.c.h.b16 %v420
        %v666 = vunpack.c.l.b16 %v421
        %v667 = vunpack.c.h.b16 %v421
        %v668 = vunpack.c.l.b16 %v422
        %v669 = vunpack.c.h.b16 %v422
        %v670 = vunpack.c.l.b16 %v423
        %v671 = vunpack.c.h.b16 %v423
        %v672 = vunpack.c.l.b16 %v424
        %v673 = vunpack.c.h.b16 %v424
        %v674 = vunpack.c.l.b16 %v425
        %v675 = vunpack.c.h.b16 %v425
        %v676 = vunpack.c.l.b16 %v426
        %v677 = vunpack.c.h.b16 %v426
        %v678 = vunpack.c.l.b16 %v427
        %v679 = vunpack.c.h.b16 %v427
        %v680 = vunpack.c.l.b16 %v428
        %v681 = vunpack.c.h.b16 %v428
        %v682 = vunpack.c.l.b16 %v429
        %v683 = vunpack.c.h.b16 %v429
        %v684 = vunpack.c.l.b16 %v430
        %v685 = vunpack.c.h.b16 %v430
        %v686 = vunpack.c.l.b16 %v431
        %v687 = vunpack.c.h.b16 %v431
        %v688 = vunpack.c.l.b16 %v432
        %v689 = vunpack.c.h.b16 %v432
        %v690 = vunpack.c.l.b16 %v433
        %v691 = vunpack.c.h.b16 %v433
        %v692 = vunpack.c.l.b16 %v434
        %v693 = vunpack.c.h.b16 %v434
        %v694 = vunpack.c.l.b16 %v435
        %v695 = vunpack.c.h.b16 %v435
        %v696 = vunpack.c.l.b16 %v436
        %v697 = vunpack.c.h.b16 %v436
        %v698 = vunpack.c.l.b16 %v437
        %v699 = vunpack.c.h.b16 %v437
        %v700 = vunpack.c.l.b16 %v438
        %v701 = vunpack.c.h.b16 %v438
        %v702 = vunpack.c.l.b16 %v439
        %v703 = vunpack.c.h.b16 %v439
        %v704 = vunpack.c.l.b16 %v440
        %v705 = vunpack.c.h.b16 %v440
        %v706 = vunpack.c.l.b16 %v441
        %v707 = vunpack.c.h.b16 %v441
        %v708 = vunpack.c.l.b16 %v442
        %v709 = vunpack.c.h.b16 %v442
        %v710 = vunpack.c.l.b16 %v443
        %v711 = vunpack.c.h.b16 %v443
        %v712 = vunpack.c.l.b16 %v444
        %v713 = vunpack.c.h.b16 %v444
        %v714 = vunpack.c.l.b16 %v445
        %v715 = vunpack.c.h.b16 %v445
        %v716 = vunpack.c.l.b16 %v446
        %v717 = vunpack.c.h.b16 %v446
        %v718 = vunpack.c.l.b16 %v447
        %v719 = vunpack.c.h.b16 %v447
        %v720 = vunpack.c.l.b16 %v448
        %v721 = vunpack.c.h.b16 %v448
        %v722 = vunpack.c.l.b16 %v449
        %v723 = vunpack.c.h.b16 %v449
        %v724 = vunpack.c.l.b16 %v450
        %v725 = vunpack.c.h.b16 %v450
        %v726 = vunpack.c.l.b16 %v451
        %v727 = vunpack.c.h.b16 %v451
        %v728 = vunpack.c.l.b16 %v452
        %v729 = vunpack.c.h.b16 %v452
        %v730 = vunpack.c.l.b16 %v453
        %v731 = vunpack.c.h.b16 %v453
        %v732 = vunpack.c.l.b16 %v454
        %v733 = vunpack.c.h.b16 %v454
        %v734 = vunpack.c.l.b16 %v455
        %v735 = vunpack.c.h.b16 %v455
        %v736 = vunpack.c.l.b16 %v456
        %v737 = vunpack.c.h.b16 %v456
        %v738 = vunpack.c.l.b16 %v457
        %v739 = vunpack.c.h.b16 %v457
        %v740 = vunpack.c.l.b16 %v458
        %v741 = vunpack.c.h.b16 %v458
        %v742 = vunpack.c.l.b16 %v459
        %v743 = vunpack.c.h.b16 %v459
        %v744 = vunpack.c.l.b16 %v460
        %v745 = vunpack.c.h.b16 %v460
        %v746 = vunpack.c.l.b16 %v461
        %v747 = vunpack.c.h.b16 %v461
        %v748 = vunpack.c.l.b16 %v462
        %v749 = vunpack.c.h.b16 %v462
        %v750 = vunpack.c.l.b16 %v463
        %v751 = vunpack.c.h.b16 %v463
        %v752 = vpack.c.b16 %v564, %v560
        %v753 = vpack.c.b16 %v565, %v561
        %v754 = vpack.c.b16 %v566, %v562
        %v755 = vpack.c.b16 %v567, %v563
        %v756 = vpack.c.b16 %v572, %v568
        %v757 = vpack.c.b16 %v573, %v569
        %v758 = vpack.c.b16 %v574, %v570
        %v759 = vpack.c.b16 %v575, %v571
        %v760 = vpack.c.b16 %v580, %v576
        %v761 = vpack.c.b16 %v581, %v577
        %v762 = vpack.c.b16 %v582, %v578
        %v763 = vpack.c.b16 %v583, %v579
        %v764 = vpack.c.b16 %v588, %v584
        %v765 = vpack.c.b16 %v589, %v585
        %v766 = vpack.c.b16 %v590, %v586
        %v767 = vpack.c.b16 %v591, %v587
        %v768 = vpack.c.b16 %v596, %v592
        %v769 = vpack.c.b16 %v597, %v593
        %v770 = vpack.c.b16 %v598, %v594
        %v771 = vpack.c.b16 %v599, %v595
        %v772 = vpack.c.b16 %v604, %v600
        %v773 = vpack.c.b16 %v605, %v601
        %v774 = vpack.c.b16 %v606, %v602
        %v775 = vpack.c.b16 %v607, %v603
        %v776 = vpack.c.b16 %v612, %v608
        %v777 = vpack.c.b16 %v613, %v609
        %v778 = vpack.c.b16 %v614, %v610
        %v779 = vpack.c.b16 %v615, %v611
        %v780 = vpack.c.b16 %v620, %v616
        %v781 = vpack.c.b16 %v621, %v617
        %v782 = vpack.c.b16 %v622, %v618
        %v783 = vpack.c.b16 %v623, %v619
        %v784 = vpack.c.b16 %v628, %v624
        %v785 = vpack.c.b16 %v629, %v625
        %v786 = vpack.c.b16 %v630, %v626
        %v787 = vpack.c.b16 %v631, %v627
        %v788 = vpack.c.b16 %v636, %v632
        %v789 = vpack.c.b16 %v637, %v633
        %v790 = vpack.c.b16 %v638, %v634
        %v791 = vpack.c.b16 %v639, %v635
        %v792 = vpack.c.b16 %v644, %v640
        %v793 = vpack.c.b16 %v645, %v641
        %v794 = vpack.c.b16 %v646, %v642
        %v795 = vpack.c.b16 %v647, %v643
        %v796 = vpack.c.b16 %v652, %v648
        %v797 = vpack.c.b16 %v653, %v649
        %v798 = vpack.c.b16 %v654, %v650
        %v799 = vpack.c.b16 %v655, %v651
        %v800 = vpack.c.b16 %v660, %v656
        %v801 = vpack.c.b16 %v661, %v657
        %v802 = vpack.c.b16 %v662, %v658
        %v803 = vpack.c.b16 %v663, %v659
        %v804 = vpack.c.b16 %v668, %v664
        %v805 = vpack.c.b16 %v669, %v665
        %v806 = vpack.c.b16 %v670, %v666
        %v807 = vpack.c.b16 %v671, %v667
        %v808 = vpack.c.b16 %v676, %v672
        %v809 = vpack.c.b16 %v677, %v673
        %v810 = vpack.c.b16 %v678, %v674
        %v811 = vpack.c.b16 %v679, %v675
        %v812 = vpack.c.b16 %v684, %v680
        %v813 = vpack.c.b16 %v685, %v681
        %v814 = vpack.c.b16 %v686, %v682
        %v815 = vpack.c.b16 %v687, %v683
        %v816 = vpack.c.b16 %v692, %v688
        %v817 = vpack.c.b16 %v693, %v689
        %v818 = vpack.c.b16 %v694, %v690
        %v819 = vpack.c.b16 %v695, %v691
        %v820 = vpack.c.b16 %v700, %v696
        %v821 = vpack.c.b16 %v701, %v697
        %v822 = vpack.c.b16 %v702, %v698
        %v823 = vpack.c.b16 %v703, %v699
        %v824 = vpack.c.b16 %v708, %v704
        %v825 = vpack.c.b16 %v709, %v705
        %v826 = vpack.c.b16 %v710, %v706
        %v827 = vpack.c.b16 %v711, %v707
        %v828 = vpack.c.b16 %v716, %v712
        %v829 = vpack.c.b16 %v717, %v713
        %v830 = vpack.c.b16 %v718, %v714
        %v831 = vpack.c.b16 %v719, %v715
        %v832 = vpack.c.b16 %v724, %v720
        %v833 = vpack.c.b16 %v725, %v721
        %v834 = vpack.c.b16 %v726, %v722
        %v835 = vpack.c.b16 %v727, %v723
        %v836 = vpack.c.b16 %v732, %v728
        %v837 = vpack.c.b16 %v733, %v729
        %v838 = vpack.c.b16 %v734, %v730
        %v839 = vpack.c.b16 %v735, %v731
        %v840 = vpack.c.b16 %v740, %v736
        %v841 = vpack.c.b16 %v741, %v737
        %v842 = vpack.c.b16 %v742, %v738
        %v843 = vpack.c.b16 %v743, %v739
        %v844 = vpack.c.b16 %v748, %v744
        %v845 = vpack.c.b16 %v749, %v745
        %v846 = vpack.c.b16 %v750, %v746
        %v847 = vpack.c.b16 %v751, %v747
        %944 = vmatprep.subr.bf16.mxu0 %v753
        %945 = vmatpush1.bf16.msra.mxu0 %v752
        %946 = vmatprep.subr.bf16.mxu0 %v757
        %947 = vmatpush1.bf16.msra.mxu0 %v756
        %948 = vmatprep.subr.bf16.mxu0 %v761
        %949 = vmatpush1.bf16.msra.mxu0 %v760
        %950 = vmatprep.subr.bf16.mxu0 %v765
        %951 = vmatpush1.bf16.msra.mxu0 %v764
        %952 = vmatprep.subr.bf16.mxu0 %v769
        %953 = vmatpush1.bf16.msra.mxu0 %v768
        %954 = vmatprep.subr.bf16.mxu0 %v773
        %955 = vmatpush1.bf16.msra.mxu0 %v772
        %956 = vmatprep.subr.bf16.mxu0 %v777
        %957 = vmatpush1.bf16.msra.mxu0 %v776
        %958 = vmatprep.subr.bf16.mxu0 %v781
        %959 = vmatpush1.bf16.msra.mxu0 %v780
        %960 = vmatprep.subr.bf16.mxu0 %v785
        %961 = vmatpush1.bf16.msra.mxu0 %v784
        %962 = vmatprep.subr.bf16.mxu0 %v789
        %963 = vmatpush1.bf16.msra.mxu0 %v788
        %964 = vmatprep.subr.bf16.mxu0 %v793
        %965 = vmatpush1.bf16.msra.mxu0 %v792
        %966 = vmatprep.subr.bf16.mxu0 %v797
        %967 = vmatpush1.bf16.msra.mxu0 %v796
        %968 = vmatprep.subr.bf16.mxu0 %v801
        %969 = vmatpush1.bf16.msra.mxu0 %v800
        %970 = vmatprep.subr.bf16.mxu0 %v805
        %971 = vmatpush1.bf16.msra.mxu0 %v804
        %972 = vmatprep.subr.bf16.mxu0 %v809
        %973 = vmatpush1.bf16.msra.mxu0 %v808
        %974 = vmatprep.subr.bf16.mxu0 %v813
        %975 = vmatpush1.bf16.msra.mxu0 %v812
        %976 = vmatprep.mubr.bf16.mxu0 %v366
        %977 = vmatmul.mubr.bf16.gmra.mrb[0].mxu0 %v365
        %v978 = vpop.f32.mrb[0].mxu0
        %v979 = vadd.f32 %v295, %v978
        %v980 = vpop.f32.mrb[0].mxu0
        %v981 = vadd.f32 %v299, %v980
        %v982 = vpop.f32.mrb[0].mxu0
        %v983 = vadd.f32 %v295, %v982
        %v984 = vpop.f32.mrb[0].mxu0
        %v985 = vadd.f32 %v299, %v984
        %986 = vdwg.mxu0
        %987 = vmatprep.subr.bf16.mxu0 %v817
        %988 = vmatpush1.bf16.msra.mxu0 %v816
        %989 = vmatprep.subr.bf16.mxu0 %v821
        %990 = vmatpush1.bf16.msra.mxu0 %v820
        %991 = vmatprep.subr.bf16.mxu0 %v825
        %992 = vmatpush1.bf16.msra.mxu0 %v824
        %993 = vmatprep.subr.bf16.mxu0 %v829
        %994 = vmatpush1.bf16.msra.mxu0 %v828
        %995 = vmatprep.subr.bf16.mxu0 %v833
        %996 = vmatpush1.bf16.msra.mxu0 %v832
        %997 = vmatprep.subr.bf16.mxu0 %v837
        %998 = vmatpush1.bf16.msra.mxu0 %v836
        %999 = vmatprep.subr.bf16.mxu0 %v841
        %1000 = vmatpush1.bf16.msra.mxu0 %v840
        %1001 = vmatprep.subr.bf16.mxu0 %v845
        %1002 = vmatpush1.bf16.msra.mxu0 %v844
        %1003 = vmatprep.subr.bf16.mxu0 0
        %1004 = vmatpush1.bf16.msra.mxu0 0
        %1005 = vmatprep.subr.bf16.mxu0 0
        %1006 = vmatpush1.bf16.msra.mxu0 0
        %1007 = vmatprep.subr.bf16.mxu0 0
        %1008 = vmatpush1.bf16.msra.mxu0 0
        %1009 = vmatprep.subr.bf16.mxu0 0
        %1010 = vmatpush1.bf16.msra.mxu0 0
        %1011 = vmatprep.subr.bf16.mxu0 0
        %1012 = vmatpush1.bf16.msra.mxu0 0
        %1013 = vmatprep.subr.bf16.mxu0 0
        %1014 = vmatpush1.bf16.msra.mxu0 0
        %1015 = vmatprep.subr.bf16.mxu0 0
        %1016 = vmatpush1.bf16.msra.mxu0 0
        %1017 = vmatprep.subr.bf16.mxu0 0
        %1018 = vmatpush1.bf16.msra.mxu0 0
        %1019 = vmatprep.mubr.bf16.mxu0 0
        %1020 = vmatmul.mubr.bf16.gmra.mrb[0].mxu0 %v367
        %v1021 = vpop.f32.mrb[0].mxu0
        %v1022 = vadd.f32 %v979, %v1021
        %v1023 = vpop.f32.mrb[0].mxu0
        %v1024 = vadd.f32 %v981, %v1023
        %v1025 = vpop.f32.mrb[0].mxu0
        %v1026 = vadd.f32 %v983, %v1025
        %v1027 = vpop.f32.mrb[0].mxu0
        %v1028 = vadd.f32 %v985, %v1027
        %1029 = vdwg.mxu0
        %1030 = vmatprep.subr.bf16.mxu0 %v755
        %1031 = vmatpush1.bf16.msra.mxu0 %v754
        %1032 = vmatprep.subr.bf16.mxu0 %v759
        %1033 = vmatpush1.bf16.msra.mxu0 %v758
        %1034 = vmatprep.subr.bf16.mxu0 %v763
        %1035 = vmatpush1.bf16.msra.mxu0 %v762
        %1036 = vmatprep.subr.bf16.mxu0 %v767
        %1037 = vmatpush1.bf16.msra.mxu0 %v766
        %1038 = vmatprep.subr.bf16.mxu0 %v771
        %1039 = vmatpush1.bf16.msra.mxu0 %v770
        %1040 = vmatprep.subr.bf16.mxu0 %v775
        %1041 = vmatpush1.bf16.msra.mxu0 %v774
        %1042 = vmatprep.subr.bf16.mxu0 %v779
        %1043 = vmatpush1.bf16.msra.mxu0 %v778
        %1044 = vmatprep.subr.bf16.mxu0 %v783
        %1045 = vmatpush1.bf16.msra.mxu0 %v782
        %1046 = vmatprep.subr.bf16.mxu0 %v787
        %1047 = vmatpush1.bf16.msra.mxu0 %v786
        %1048 = vmatprep.subr.bf16.mxu0 %v791
        %1049 = vmatpush1.bf16.msra.mxu0 %v790
        %1050 = vmatprep.subr.bf16.mxu0 %v795
        %1051 = vmatpush1.bf16.msra.mxu0 %v794
        %1052 = vmatprep.subr.bf16.mxu0 %v799
        %1053 = vmatpush1.bf16.msra.mxu0 %v798
        %1054 = vmatprep.subr.bf16.mxu0 %v803
        %1055 = vmatpush1.bf16.msra.mxu0 %v802
        %1056 = vmatprep.subr.bf16.mxu0 %v807
        %1057 = vmatpush1.bf16.msra.mxu0 %v806
        %1058 = vmatprep.subr.bf16.mxu0 %v811
        %1059 = vmatpush1.bf16.msra.mxu0 %v810
        %1060 = vmatprep.subr.bf16.mxu0 %v815
        %1061 = vmatpush1.bf16.msra.mxu0 %v814
        %1062 = vmatprep.mubr.bf16.mxu0 %v366
        %1063 = vmatmul.mubr.bf16.gmra.mrb[0].mxu0 %v365
        %v1064 = vpop.f32.mrb[0].mxu0
        %v1065 = vadd.f32 %v303, %v1064
        %v1066 = vpop.f32.mrb[0].mxu0
        %v1067 = vadd.f32 %v307, %v1066
        %v1068 = vpop.f32.mrb[0].mxu0
        %v1069 = vadd.f32 %v303, %v1068
        %v1070 = vpop.f32.mrb[0].mxu0
        %v1071 = vadd.f32 %v307, %v1070
        %1072 = vdwg.mxu0
        %1073 = vmatprep.subr.bf16.mxu0 %v819
        %1074 = vmatpush1.bf16.msra.mxu0 %v818
        %1075 = vmatprep.subr.bf16.mxu0 %v823
        %1076 = vmatpush1.bf16.msra.mxu0 %v822
        %1077 = vmatprep.subr.bf16.mxu0 %v827
        %1078 = vmatpush1.bf16.msra.mxu0 %v826
        %1079 = vmatprep.subr.bf16.mxu0 %v831
        %1080 = vmatpush1.bf16.msra.mxu0 %v830
        %1081 = vmatprep.subr.bf16.mxu0 %v835
        %1082 = vmatpush1.bf16.msra.mxu0 %v834
        %1083 = vmatprep.subr.bf16.mxu0 %v839
        %1084 = vmatpush1.bf16.msra.mxu0 %v838
        %1085 = vmatprep.subr.bf16.mxu0 %v843
        %1086 = vmatpush1.bf16.msra.mxu0 %v842
        %1087 = vmatprep.subr.bf16.mxu0 %v847
        %1088 = vmatpush1.bf16.msra.mxu0 %v846
        %1089 = vmatprep.subr.bf16.mxu0 0
        %1090 = vmatpush1.bf16.msra.mxu0 0
        %1091 = vmatprep.subr.bf16.mxu0 0
        %1092 = vmatpush1.bf16.msra.mxu0 0
        %1093 = vmatprep.subr.bf16.mxu0 0
        %1094 = vmatpush1.bf16.msra.mxu0 0
        %1095 = vmatprep.subr.bf16.mxu0 0
        %1096 = vmatpush1.bf16.msra.mxu0 0
        %1097 = vmatprep.subr.bf16.mxu0 0
        %1098 = vmatpush1.bf16.msra.mxu0 0
        %1099 = vmatprep.subr.bf16.mxu0 0
        %1100 = vmatpush1.bf16.msra.mxu0 0
        %1101 = vmatprep.subr.bf16.mxu0 0
        %1102 = vmatpush1.bf16.msra.mxu0 0
        %1103 = vmatprep.subr.bf16.mxu0 0
        %1104 = vmatpush1.bf16.msra.mxu0 0
        %1105 = vmatprep.mubr.bf16.mxu0 0
        %1106 = vmatmul.mubr.bf16.gmra.mrb[0].mxu0 %v367
        %v1107 = vpop.f32.mrb[0].mxu0
        %v1108 = vadd.f32 %v1065, %v1107
        %v1109 = vpop.f32.mrb[0].mxu0
        %v1110 = vadd.f32 %v1067, %v1109
        %v1111 = vpop.f32.mrb[0].mxu0
        %v1112 = vadd.f32 %v1069, %v1111
        %v1113 = vpop.f32.mrb[0].mxu0
        %v1114 = vadd.f32 %v1071, %v1113
        %1115 = vdwg.mxu0
        %v1116 = vmax.f32 %v1022, 0.0
        %v1117 = vmax.f32 %v1024, 0.0
        %v1118 = vmax.f32 %v1108, 0.0
        %v1119 = vmax.f32 %v1110, 0.0
        %v1120 = vmax.f32 %v1026, 0.0
        %v1121 = vmax.f32 %v1028, 0.0
        %v1122 = vmax.f32 %v1112, 0.0
        %v1123 = vmax.f32 %v1114, 0.0
        %v1124 = vpack.c.bf16 %v1120, %v1116
        %v1125 = vpack.c.bf16 %v1121, %v1117
        %v1126 = vpack.c.bf16 %v1122, %v1118
        %v1127 = vpack.c.bf16 %v1123, %v1119
        %v1128 = vld [vmem:[#allocation7] sm:$0xf]
        %v1129 = vld [vmem:[#allocation7 + $0x4] sm:$0xf]
        %v1130 = vld [vmem:[#allocation7 + $0x8] sm:$0xf]
        %v1131 = vld [vmem:[#allocation7 + $0xc] sm:$0xf]
        %v1132 = vld [vmem:[#allocation7 + $0x10] sm:$0xf]
        %v1133 = vld [vmem:[#allocation7 + $0x14] sm:$0xf]
        %v1134 = vld [vmem:[#allocation7 + $0x18] sm:$0xf]
        %v1135 = vld [vmem:[#allocation7 + $0x1c] sm:$0xf]
        %v1136 = vld [vmem:[#allocation7 + $0x20] sm:$0xf]
        %v1137 = vld [vmem:[#allocation7 + $0x24] sm:$0xf]
        %v1138 = vld [vmem:[#allocation7 + $0x28] sm:$0xf]
        %v1139 = vld [vmem:[#allocation7 + $0x2c] sm:$0xf]
        %v1140 = vld [vmem:[#allocation7 + $0x30] sm:$0xf]
        %v1141 = vld [vmem:[#allocation7 + $0x34] sm:$0xf]
        %v1142 = vld [vmem:[#allocation7 + $0x38] sm:$0xf]
        %v1143 = vld [vmem:[#allocation7 + $0x3c] sm:$0xf]
        %v1144 = vld [vmem:[#allocation7 + $0x40] sm:$0xf]
        %v1145 = vld [vmem:[#allocation7 + $0x44] sm:$0xf]
        %v1146 = vld [vmem:[#allocation7 + $0x48] sm:$0xf]
        %v1147 = vld [vmem:[#allocation7 + $0x4c] sm:$0xf]
        %v1148 = vld [vmem:[#allocation7 + $0x50] sm:$0xf]
        %v1149 = vld [vmem:[#allocation7 + $0x54] sm:$0xf]
        %v1150 = vld [vmem:[#allocation7 + $0x58] sm:$0xf]
        %v1151 = vld [vmem:[#allocation7 + $0x5c] sm:$0xf]
        %v1152 = vld [vmem:[#allocation7 + $0x60] sm:$0xf]
        %v1153 = vld [vmem:[#allocation7 + $0x64] sm:$0xf]
        %v1154 = vld [vmem:[#allocation7 + $0x68] sm:$0xf]
        %v1155 = vld [vmem:[#allocation7 + $0x6c] sm:$0xf]
        %v1156 = vld [vmem:[#allocation7 + $0x70] sm:$0xf]
        %v1157 = vld [vmem:[#allocation7 + $0x74] sm:$0xf]
        %v1158 = vld [vmem:[#allocation7 + $0x78] sm:$0xf]
        %v1159 = vld [vmem:[#allocation7 + $0x7c] sm:$0xf]
        %v1160 = vld [vmem:[#allocation7 + $0x80] sm:$0xf]
        %v1161 = vld [vmem:[#allocation7 + $0x84] sm:$0xf]
        %v1162 = vld [vmem:[#allocation7 + $0x88] sm:$0xf]
        %v1163 = vld [vmem:[#allocation7 + $0x8c] sm:$0xf]
        %v1164 = vld [vmem:[#allocation7 + $0x90] sm:$0xf]
        %v1165 = vld [vmem:[#allocation7 + $0x94] sm:$0xf]
        %v1166 = vld [vmem:[#allocation7 + $0x98] sm:$0xf]
        %v1167 = vld [vmem:[#allocation7 + $0x9c] sm:$0xf]
        %v1168 = vld [vmem:[#allocation7 + $0xa0] sm:$0xf]
        %v1169 = vld [vmem:[#allocation7 + $0xa4] sm:$0xf]
        %v1170 = vld [vmem:[#allocation7 + $0xa8] sm:$0xf]
        %v1171 = vld [vmem:[#allocation7 + $0xac] sm:$0xf]
        %v1172 = vld [vmem:[#allocation7 + $0xb0] sm:$0xf]
        %v1173 = vld [vmem:[#allocation7 + $0xb4] sm:$0xf]
        %v1174 = vld [vmem:[#allocation7 + $0xb8] sm:$0xf]
        %v1175 = vld [vmem:[#allocation7 + $0xbc] sm:$0xf]
        %v1176 = vld [vmem:[#allocation7 + $0xc0] sm:$0xf]
        %v1177 = vld [vmem:[#allocation7 + $0xc4] sm:$0xf]
        %v1178 = vld [vmem:[#allocation7 + $0xc8] sm:$0xf]
        %v1179 = vld [vmem:[#allocation7 + $0xcc] sm:$0xf]
        %v1180 = vld [vmem:[#allocation7 + $0xd0] sm:$0xf]
        %v1181 = vld [vmem:[#allocation7 + $0xd4] sm:$0xf]
        %v1182 = vld [vmem:[#allocation7 + $0xd8] sm:$0xf]
        %v1183 = vld [vmem:[#allocation7 + $0xdc] sm:$0xf]
        %v1184 = vld [vmem:[#allocation7 + $0xe0] sm:$0xf]
        %v1185 = vld [vmem:[#allocation7 + $0xe4] sm:$0xf]
        %v1186 = vld [vmem:[#allocation7 + $0xe8] sm:$0xf]
        %v1187 = vld [vmem:[#allocation7 + $0xec] sm:$0xf]
        %v1188 = vld [vmem:[#allocation7 + $0xf0] sm:$0xf]
        %v1189 = vld [vmem:[#allocation7 + $0xf4] sm:$0xf]
        %v1190 = vld [vmem:[#allocation7 + $0xf8] sm:$0xf]
        %v1191 = vld [vmem:[#allocation7 + $0xfc] sm:$0xf]
        %v1256 = vunpack.c.l.b16 %v1128
        %v1257 = vunpack.c.l.b16 %v1129
        %v1258 = vunpack.c.l.b16 %v1130
        %v1259 = vunpack.c.l.b16 %v1131
        %v1260 = vunpack.c.l.b16 %v1132
        %v1261 = vunpack.c.l.b16 %v1133
        %v1262 = vunpack.c.l.b16 %v1134
        %v1263 = vunpack.c.l.b16 %v1135
        %v1264 = vunpack.c.l.b16 %v1136
        %v1265 = vunpack.c.l.b16 %v1137
        %v1266 = vunpack.c.l.b16 %v1138
        %v1267 = vunpack.c.l.b16 %v1139
        %v1268 = vunpack.c.l.b16 %v1140
        %v1269 = vunpack.c.l.b16 %v1141
        %v1270 = vunpack.c.l.b16 %v1142
        %v1271 = vunpack.c.l.b16 %v1143
        %v1272 = vunpack.c.l.b16 %v1144
        %v1273 = vunpack.c.l.b16 %v1145
        %v1274 = vunpack.c.l.b16 %v1146
        %v1275 = vunpack.c.l.b16 %v1147
        %v1276 = vunpack.c.l.b16 %v1148
        %v1277 = vunpack.c.l.b16 %v1149
        %v1278 = vunpack.c.l.b16 %v1150
        %v1279 = vunpack.c.l.b16 %v1151
        %v1280 = vunpack.c.l.b16 %v1152
        %v1281 = vunpack.c.l.b16 %v1153
        %v1282 = vunpack.c.l.b16 %v1154
        %v1283 = vunpack.c.l.b16 %v1155
        %v1284 = vunpack.c.l.b16 %v1156
        %v1285 = vunpack.c.l.b16 %v1157
        %v1286 = vunpack.c.l.b16 %v1158
        %v1287 = vunpack.c.l.b16 %v1159
        %v1288 = vunpack.c.l.b16 %v1160
        %v1289 = vunpack.c.l.b16 %v1161
        %v1290 = vunpack.c.l.b16 %v1162
        %v1291 = vunpack.c.l.b16 %v1163
        %v1292 = vunpack.c.l.b16 %v1164
        %v1293 = vunpack.c.l.b16 %v1165
        %v1294 = vunpack.c.l.b16 %v1166
        %v1295 = vunpack.c.l.b16 %v1167
        %v1296 = vunpack.c.l.b16 %v1168
        %v1297 = vunpack.c.l.b16 %v1169
        %v1298 = vunpack.c.l.b16 %v1170
        %v1299 = vunpack.c.l.b16 %v1171
        %v1300 = vunpack.c.l.b16 %v1172
        %v1301 = vunpack.c.l.b16 %v1173
        %v1302 = vunpack.c.l.b16 %v1174
        %v1303 = vunpack.c.l.b16 %v1175
        %v1304 = vunpack.c.l.b16 %v1176
        %v1305 = vunpack.c.l.b16 %v1177
        %v1306 = vunpack.c.l.b16 %v1178
        %v1307 = vunpack.c.l.b16 %v1179
        %v1308 = vunpack.c.l.b16 %v1180
        %v1309 = vunpack.c.l.b16 %v1181
        %v1310 = vunpack.c.l.b16 %v1182
        %v1311 = vunpack.c.l.b16 %v1183
        %v1312 = vunpack.c.l.b16 %v1184
        %v1313 = vunpack.c.l.b16 %v1185
        %v1314 = vunpack.c.l.b16 %v1186
        %v1315 = vunpack.c.l.b16 %v1187
        %v1316 = vunpack.c.l.b16 %v1188
        %v1317 = vunpack.c.l.b16 %v1189
        %v1318 = vunpack.c.l.b16 %v1190
        %v1319 = vunpack.c.l.b16 %v1191
        %v1320 = vpack.c.b16 %v1257, %v1256
        %v1321 = vpack.c.b16 %v1259, %v1258
        %v1322 = vpack.c.b16 %v1261, %v1260
        %v1323 = vpack.c.b16 %v1263, %v1262
        %v1324 = vpack.c.b16 %v1265, %v1264
        %v1325 = vpack.c.b16 %v1267, %v1266
        %v1326 = vpack.c.b16 %v1269, %v1268
        %v1327 = vpack.c.b16 %v1271, %v1270
        %v1328 = vpack.c.b16 %v1273, %v1272
        %v1329 = vpack.c.b16 %v1275, %v1274
        %v1330 = vpack.c.b16 %v1277, %v1276
        %v1331 = vpack.c.b16 %v1279, %v1278
        %v1332 = vpack.c.b16 %v1281, %v1280
        %v1333 = vpack.c.b16 %v1283, %v1282
        %v1334 = vpack.c.b16 %v1285, %v1284
        %v1335 = vpack.c.b16 %v1287, %v1286
        %v1336 = vpack.c.b16 %v1289, %v1288
        %v1337 = vpack.c.b16 %v1291, %v1290
        %v1338 = vpack.c.b16 %v1293, %v1292
        %v1339 = vpack.c.b16 %v1295, %v1294
        %v1340 = vpack.c.b16 %v1297, %v1296
        %v1341 = vpack.c.b16 %v1299, %v1298
        %v1342 = vpack.c.b16 %v1301, %v1300
        %v1343 = vpack.c.b16 %v1303, %v1302
        %v1344 = vpack.c.b16 %v1305, %v1304
        %v1345 = vpack.c.b16 %v1307, %v1306
        %v1346 = vpack.c.b16 %v1309, %v1308
        %v1347 = vpack.c.b16 %v1311, %v1310
        %v1348 = vpack.c.b16 %v1313, %v1312
        %v1349 = vpack.c.b16 %v1315, %v1314
        %v1350 = vpack.c.b16 %v1317, %v1316
        %v1351 = vpack.c.b16 %v1319, %v1318
        %1384 = vmatprep.subr.bf16.mxu0 0
        %1385 = vmatpush1.bf16.msra.mxu0 %v1320
        %1386 = vmatprep.subr.bf16.mxu0 0
        %1387 = vmatpush1.bf16.msra.mxu0 %v1321
        %1388 = vmatprep.subr.bf16.mxu0 0
        %1389 = vmatpush1.bf16.msra.mxu0 %v1322
        %1390 = vmatprep.subr.bf16.mxu0 0
        %1391 = vmatpush1.bf16.msra.mxu0 %v1323
        %1392 = vmatprep.subr.bf16.mxu0 0
        %1393 = vmatpush1.bf16.msra.mxu0 %v1324
        %1394 = vmatprep.subr.bf16.mxu0 0
        %1395 = vmatpush1.bf16.msra.mxu0 %v1325
        %1396 = vmatprep.subr.bf16.mxu0 0
        %1397 = vmatpush1.bf16.msra.mxu0 %v1326
        %1398 = vmatprep.subr.bf16.mxu0 0
        %1399 = vmatpush1.bf16.msra.mxu0 %v1327
        %1400 = vmatprep.subr.bf16.mxu0 0
        %1401 = vmatpush1.bf16.msra.mxu0 %v1328
        %1402 = vmatprep.subr.bf16.mxu0 0
        %1403 = vmatpush1.bf16.msra.mxu0 %v1329
        %1404 = vmatprep.subr.bf16.mxu0 0
        %1405 = vmatpush1.bf16.msra.mxu0 %v1330
        %1406 = vmatprep.subr.bf16.mxu0 0
        %1407 = vmatpush1.bf16.msra.mxu0 %v1331
        %1408 = vmatprep.subr.bf16.mxu0 0
        %1409 = vmatpush1.bf16.msra.mxu0 %v1332
        %1410 = vmatprep.subr.bf16.mxu0 0
        %1411 = vmatpush1.bf16.msra.mxu0 %v1333
        %1412 = vmatprep.subr.bf16.mxu0 0
        %1413 = vmatpush1.bf16.msra.mxu0 %v1334
        %1414 = vmatprep.subr.bf16.mxu0 0
        %1415 = vmatpush1.bf16.msra.mxu0 %v1335
        %1416 = vmatprep.mubr.bf16.mxu0 %v1125
        %1417 = vmatmul.mubr.bf16.gmra.mrb[0].mxu0 %v1124
        %v1418 = vpop.f32.mrb[0].mxu0
        %v1419 = vadd.f32 0.0, %v1418
        %v1420 = vpop.f32.mrb[0].mxu0
        %v1421 = vpop.f32.mrb[0].mxu0
        %v1422 = vadd.f32 0.0, %v1421
        %v1423 = vpop.f32.mrb[0].mxu0
        %1424 = vdwg.mxu0
        %1425 = vmatprep.subr.bf16.mxu0 0
        %1426 = vmatpush1.bf16.msra.mxu0 %v1336
        %1427 = vmatprep.subr.bf16.mxu0 0
        %1428 = vmatpush1.bf16.msra.mxu0 %v1337
        %1429 = vmatprep.subr.bf16.mxu0 0
        %1430 = vmatpush1.bf16.msra.mxu0 %v1338
        %1431 = vmatprep.subr.bf16.mxu0 0
        %1432 = vmatpush1.bf16.msra.mxu0 %v1339
        %1433 = vmatprep.subr.bf16.mxu0 0
        %1434 = vmatpush1.bf16.msra.mxu0 %v1340
        %1435 = vmatprep.subr.bf16.mxu0 0
        %1436 = vmatpush1.bf16.msra.mxu0 %v1341
        %1437 = vmatprep.subr.bf16.mxu0 0
        %1438 = vmatpush1.bf16.msra.mxu0 %v1342
        %1439 = vmatprep.subr.bf16.mxu0 0
        %1440 = vmatpush1.bf16.msra.mxu0 %v1343
        %1441 = vmatprep.subr.bf16.mxu0 0
        %1442 = vmatpush1.bf16.msra.mxu0 %v1344
        %1443 = vmatprep.subr.bf16.mxu0 0
        %1444 = vmatpush1.bf16.msra.mxu0 %v1345
        %1445 = vmatprep.subr.bf16.mxu0 0
        %1446 = vmatpush1.bf16.msra.mxu0 %v1346
        %1447 = vmatprep.subr.bf16.mxu0 0
        %1448 = vmatpush1.bf16.msra.mxu0 %v1347
        %1449 = vmatprep.subr.bf16.mxu0 0
        %1450 = vmatpush1.bf16.msra.mxu0 %v1348
        %1451 = vmatprep.subr.bf16.mxu0 0
        %1452 = vmatpush1.bf16.msra.mxu0 %v1349
        %1453 = vmatprep.subr.bf16.mxu0 0
        %1454 = vmatpush1.bf16.msra.mxu0 %v1350
        %1455 = vmatprep.subr.bf16.mxu0 0
        %1456 = vmatpush1.bf16.msra.mxu0 %v1351
        %1457 = vmatprep.mubr.bf16.mxu0 %v1127
        %1458 = vmatmul.mubr.bf16.gmra.mrb[0].mxu0 %v1126
        %v1459 = vpop.f32.mrb[0].mxu0
        %v1460 = vadd.f32 %v1419, %v1459
        %v1461 = vpop.f32.mrb[0].mxu0
        %v1462 = vpop.f32.mrb[0].mxu0
        %v1463 = vadd.f32 %v1422, %v1462
        %v1464 = vpop.f32.mrb[0].mxu0
        %1465 = vdwg.mxu0
        %v1466 = vadd.f32 %v288, %v1460
        %v1467 = vadd.f32 %v289, %v1463
        %v1468 = vrot.slane %v1466, 7
        %v1469 = vrot.slane %v1467, 7
        %v1470 = vsel %vm353, %v1468, %v1469
        %v1471 = vsel %vm353, %v1469, %v1468
        %v1472 = vmul.f32 %v1471, %v343
        %v1473 = vmul.f32 %v1470, %v344
        %v1474 = vrot.slane %v1466, 1
        %v1475 = vrot.slane %v1467, 1
        %v1476 = vsel %vm360, %v1474, %v1475
        %v1477 = vsel %vm360, %v1475, %v1474
        %v1478 = vmul.f32 %v1476, %v349
        %v1479 = vmul.f32 %v1477, %v350
        %vm1480 = vcmp.gt.f32.partialorder %v288, 0.1
        %vm1481 = vcmp.gt.f32.partialorder %v289, 0.1
        %v1482 = vsel %vm1480, 1, 0
        %v1483 = vsel %vm1481, 1, 0
        %v1484 = vcvt.s32.f32 %v1482
        %v1485 = vcvt.s32.f32 %v1483
        %vm1486 = vcmp.gt.f32.partialorder %v363, 0.1
        %vm1487 = vcmp.gt.f32.partialorder %v364, 0.1
        %v1488 = vsel %vm1486, 1, 0
        %v1489 = vsel %vm1487, 1, 0
        %v1490 = vcvt.s32.f32 %v1488
        %v1491 = vcvt.s32.f32 %v1489
        %v1492 = vadd.f32 %v1484, %v1490
        %v1493 = vadd.f32 %v1485, %v1491
        %vm1494 = vcmp.gt.f32.partialorder %v356, 0.1
        %vm1495 = vcmp.gt.f32.partialorder %v357, 0.1
        %v1496 = vsel %vm1494, 1, 0
        %v1497 = vsel %vm1495, 1, 0
        %v1498 = vcvt.s32.f32 %v1496
        %v1499 = vcvt.s32.f32 %v1497
        %v1500 = vadd.f32 %v1492, %v1498
        %v1501 = vadd.f32 %v1493, %v1499
        %vm1502 = vcmp.gt.f32.partialorder %v1466, 0.1
        %vm1503 = vcmp.gt.f32.partialorder %v1467, 0.1
        %v1504 = vsel %vm1502, 1, 0
        %v1505 = vsel %vm1503, 1, 0
        %v1506 = vcvt.s32.f32 %v1504
        %v1507 = vcvt.s32.f32 %v1505
        %vm1508 = vcmp.gt.f32.partialorder %v1478, 0.1
        %vm1509 = vcmp.gt.f32.partialorder %v1479, 0.1
        %v1510 = vsel %vm1508, 1, 0
        %v1511 = vsel %vm1509, 1, 0
        %v1512 = vcvt.s32.f32 %v1510
        %v1513 = vcvt.s32.f32 %v1511
        %v1514 = vadd.f32 %v1506, %v1512
        %v1515 = vadd.f32 %v1507, %v1513
        %vm1516 = vcmp.gt.f32.partialorder %v1472, 0.1
        %vm1517 = vcmp.gt.f32.partialorder %v1473, 0.1
        %v1518 = vsel %vm1516, 1, 0
        %v1519 = vsel %vm1517, 1, 0
        %v1520 = vcvt.s32.f32 %v1518
        %v1521 = vcvt.s32.f32 %v1519
        %v1522 = vadd.f32 %v1514, %v1520
        %v1523 = vadd.f32 %v1515, %v1521
        %v1524 = vpack.c.bf16 %v1501, %v1500
        %v1525 = vpack.c.bf16 %v1523, %v1522
        %v1526 = vld [vmem:[#allocation8] sm:$0xf]
        %v1527 = vld [vmem:[#allocation8 + $0x4] sm:$0xf]
        %v1528 = vld [vmem:[#allocation8 + $0x8] sm:$0xf]
        %v1529 = vld [vmem:[#allocation8 + $0xc] sm:$0xf]
        %v1530 = vld [vmem:[#allocation8 + $0x10] sm:$0xf]
        %v1531 = vld [vmem:[#allocation8 + $0x14] sm:$0xf]
        %v1532 = vld [vmem:[#allocation8 + $0x18] sm:$0xf]
        %v1533 = vld [vmem:[#allocation8 + $0x1c] sm:$0xf]
        %v1534 = vld [vmem:[#allocation8 + $0x20] sm:$0xf]
        %v1535 = vld [vmem:[#allocation8 + $0x24] sm:$0xf]
        %v1536 = vld [vmem:[#allocation8 + $0x28] sm:$0xf]
        %v1537 = vld [vmem:[#allocation8 + $0x2c] sm:$0xf]
        %v1538 = vld [vmem:[#allocation8 + $0x30] sm:$0xf]
        %v1539 = vld [vmem:[#allocation8 + $0x34] sm:$0xf]
        %v1540 = vld [vmem:[#allocation8 + $0x38] sm:$0xf]
        %v1541 = vld [vmem:[#allocation8 + $0x3c] sm:$0xf]
        %v1558 = vunpack.c.l.b16 %v1526
        %v1559 = vunpack.c.l.b16 %v1527
        %v1560 = vunpack.c.l.b16 %v1528
        %v1561 = vunpack.c.l.b16 %v1529
        %v1562 = vunpack.c.l.b16 %v1530
        %v1563 = vunpack.c.l.b16 %v1531
        %v1564 = vunpack.c.l.b16 %v1532
        %v1565 = vunpack.c.l.b16 %v1533
        %v1566 = vunpack.c.l.b16 %v1534
        %v1567 = vunpack.c.l.b16 %v1535
        %v1568 = vunpack.c.l.b16 %v1536
        %v1569 = vunpack.c.l.b16 %v1537
        %v1570 = vunpack.c.l.b16 %v1538
        %v1571 = vunpack.c.l.b16 %v1539
        %v1572 = vunpack.c.l.b16 %v1540
        %v1573 = vunpack.c.l.b16 %v1541
        %v1574 = vpack.c.b16 %v1559, %v1558
        %v1575 = vpack.c.b16 %v1561, %v1560
        %v1576 = vpack.c.b16 %v1563, %v1562
        %v1577 = vpack.c.b16 %v1565, %v1564
        %v1578 = vpack.c.b16 %v1567, %v1566
        %v1579 = vpack.c.b16 %v1569, %v1568
        %v1580 = vpack.c.b16 %v1571, %v1570
        %v1581 = vpack.c.b16 %v1573, %v1572
        %1590 = vmatprep.subr.bf16.mxu0 0
        %1591 = vmatpush1.bf16.msra.mxu0 %v1574
        %1592 = vmatprep.subr.bf16.mxu0 0
        %1593 = vmatpush1.bf16.msra.mxu0 %v1575
        %1594 = vmatprep.subr.bf16.mxu0 0
        %1595 = vmatpush1.bf16.msra.mxu0 %v1576
        %1596 = vmatprep.subr.bf16.mxu0 0
        %1597 = vmatpush1.bf16.msra.mxu0 %v1577
        %1598 = vmatprep.subr.bf16.mxu0 0
        %1599 = vmatpush1.bf16.msra.mxu0 %v1578
        %1600 = vmatprep.subr.bf16.mxu0 0
        %1601 = vmatpush1.bf16.msra.mxu0 %v1579
        %1602 = vmatprep.subr.bf16.mxu0 0
        %1603 = vmatpush1.bf16.msra.mxu0 %v1580
        %1604 = vmatprep.subr.bf16.mxu0 0
        %1605 = vmatpush1.bf16.msra.mxu0 %v1581
        %1606 = vmatprep.subr.bf16.mxu0 0
        %1607 = vmatpush1.bf16.msra.mxu0 0
        %1608 = vmatprep.subr.bf16.mxu0 0
        %1609 = vmatpush1.bf16.msra.mxu0 0
        %1610 = vmatprep.subr.bf16.mxu0 0
        %1611 = vmatpush1.bf16.msra.mxu0 0
        %1612 = vmatprep.subr.bf16.mxu0 0
        %1613 = vmatpush1.bf16.msra.mxu0 0
        %1614 = vmatprep.subr.bf16.mxu0 0
        %1615 = vmatpush1.bf16.msra.mxu0 0
        %1616 = vmatprep.subr.bf16.mxu0 0
        %1617 = vmatpush1.bf16.msra.mxu0 0
        %1618 = vmatprep.subr.bf16.mxu0 0
        %1619 = vmatpush1.bf16.msra.mxu0 0
        %1620 = vmatprep.subr.bf16.mxu0 0
        %1621 = vmatpush1.bf16.msra.mxu0 0
        %1622 = vmatprep.mubr.bf16.mxu0 0
        %1623 = vmatmul.mubr.bf16.gmra.mrb[0].mxu0 %v1524
        %v1624 = vpop.f32.mrb[0].mxu0
        %v1625 = vadd.f32 0.0, %v1624
        %v1626 = vpop.f32.mrb[0].mxu0
        %v1627 = vpop.f32.mrb[0].mxu0
        %v1628 = vadd.f32 0.0, %v1627
        %v1629 = vpop.f32.mrb[0].mxu0
        %1630 = vmatprep.mubr.bf16.mxu0 0
        %1631 = vmatmul.mubr.bf16.gmra.mrb[0].mxu0 %v1525
        %v1632 = vpop.f32.mrb[0].mxu0
        %v1633 = vadd.f32 0.0, %v1632
        %v1634 = vpop.f32.mrb[0].mxu0
        %v1635 = vpop.f32.mrb[0].mxu0
        %v1636 = vadd.f32 0.0, %v1635
        %v1637 = vpop.f32.mrb[0].mxu0
        %1638 = vdwg.mxu0
        %v1639 = vmin.f32 %v1625, %v1633
        %v1640 = vmin.f32 %v1628, %v1636
        %vm1641 = vcmp.gt.f32.partialorder %v1639, 0.0
        %vm1642 = vcmp.gt.f32.partialorder %v1640, 0.0
        %v1643 = vsel %vm1641, 1, 0
        %v1644 = vsel %vm1642, 1, 0
        %v1645 = vcvt.s32.f32 %v1643
        %v1646 = vcvt.s32.f32 %v1644
        %v1647 = vmul.f32 %v1466, %v1645
        %v1648 = vmul.f32 %v1467, %v1646
        %v1649 = vrot.slane %v1647, 7
        %v1650 = vrot.slane %v1648, 7
        %v1651 = vsel %vm353, %v1649, %v1650
        %v1652 = vsel %vm353, %v1650, %v1649
        %v1653 = vmul.f32 %v1652, %v343
        %v1654 = vmul.f32 %v1651, %v344
        %v1655 = vrot.slane %v1647, 1
        %v1656 = vrot.slane %v1648, 1
        %v1657 = vsel %vm360, %v1655, %v1656
        %v1658 = vsel %vm360, %v1656, %v1655
        %v1659 = vmul.f32 %v1657, %v349
        %v1660 = vmul.f32 %v1658, %v350
        %v1661 = vpack.c.bf16 %v1654, %v1653
        %v1662 = vpack.c.bf16 %v1648, %v1647
        %v1663 = vpack.c.bf16 %v1660, %v1659
        %1664 = vmatprep.subr.bf16.mxu0 %v753
        %1665 = vmatpush1.bf16.msra.mxu0 %v752
        %1666 = vmatprep.subr.bf16.mxu0 %v757
        %1667 = vmatpush1.bf16.msra.mxu0 %v756
        %1668 = vmatprep.subr.bf16.mxu0 %v761
        %1669 = vmatpush1.bf16.msra.mxu0 %v760
        %1670 = vmatprep.subr.bf16.mxu0 %v765
        %1671 = vmatpush1.bf16.msra.mxu0 %v764
        %1672 = vmatprep.subr.bf16.mxu0 %v769
        %1673 = vmatpush1.bf16.msra.mxu0 %v768
        %1674 = vmatprep.subr.bf16.mxu0 %v773
        %1675 = vmatpush1.bf16.msra.mxu0 %v772
        %1676 = vmatprep.subr.bf16.mxu0 %v777
        %1677 = vmatpush1.bf16.msra.mxu0 %v776
        %1678 = vmatprep.subr.bf16.mxu0 %v781
        %1679 = vmatpush1.bf16.msra.mxu0 %v780
        %1680 = vmatprep.subr.bf16.mxu0 %v785
        %1681 = vmatpush1.bf16.msra.mxu0 %v784
        %1682 = vmatprep.subr.bf16.mxu0 %v789
        %1683 = vmatpush1.bf16.msra.mxu0 %v788
        %1684 = vmatprep.subr.bf16.mxu0 %v793
        %1685 = vmatpush1.bf16.msra.mxu0 %v792
        %1686 = vmatprep.subr.bf16.mxu0 %v797
        %1687 = vmatpush1.bf16.msra.mxu0 %v796
        %1688 = vmatprep.subr.bf16.mxu0 %v801
        %1689 = vmatpush1.bf16.msra.mxu0 %v800
        %1690 = vmatprep.subr.bf16.mxu0 %v805
        %1691 = vmatpush1.bf16.msra.mxu0 %v804
        %1692 = vmatprep.subr.bf16.mxu0 %v809
        %1693 = vmatpush1.bf16.msra.mxu0 %v808
        %1694 = vmatprep.subr.bf16.mxu0 %v813
        %1695 = vmatpush1.bf16.msra.mxu0 %v812
        %1696 = vmatprep.mubr.bf16.mxu0 %v1662
        %1697 = vmatmul.mubr.bf16.gmra.mrb[0].mxu0 %v1661
        %v1698 = vpop.f32.mrb[0].mxu0
        %v1699 = vadd.f32 %v295, %v1698
        %v1700 = vpop.f32.mrb[0].mxu0
        %v1701 = vadd.f32 %v299, %v1700
        %v1702 = vpop.f32.mrb[0].mxu0
        %v1703 = vadd.f32 %v295, %v1702
        %v1704 = vpop.f32.mrb[0].mxu0
        %v1705 = vadd.f32 %v299, %v1704
        %1706 = vdwg.mxu0
        %1707 = vmatprep.subr.bf16.mxu0 %v817
        %1708 = vmatpush1.bf16.msra.mxu0 %v816
        %1709 = vmatprep.subr.bf16.mxu0 %v821
        %1710 = vmatpush1.bf16.msra.mxu0 %v820
        %1711 = vmatprep.subr.bf16.mxu0 %v825
        %1712 = vmatpush1.bf16.msra.mxu0 %v824
        %1713 = vmatprep.subr.bf16.mxu0 %v829
        %1714 = vmatpush1.bf16.msra.mxu0 %v828
        %1715 = vmatprep.subr.bf16.mxu0 %v833
        %1716 = vmatpush1.bf16.msra.mxu0 %v832
        %1717 = vmatprep.subr.bf16.mxu0 %v837
        %1718 = vmatpush1.bf16.msra.mxu0 %v836
        %1719 = vmatprep.subr.bf16.mxu0 %v841
        %1720 = vmatpush1.bf16.msra.mxu0 %v840
        %1721 = vmatprep.subr.bf16.mxu0 %v845
        %1722 = vmatpush1.bf16.msra.mxu0 %v844
        %1723 = vmatprep.subr.bf16.mxu0 0
        %1724 = vmatpush1.bf16.msra.mxu0 0
        %1725 = vmatprep.subr.bf16.mxu0 0
        %1726 = vmatpush1.bf16.msra.mxu0 0
        %1727 = vmatprep.subr.bf16.mxu0 0
        %1728 = vmatpush1.bf16.msra.mxu0 0
        %1729 = vmatprep.subr.bf16.mxu0 0
        %1730 = vmatpush1.bf16.msra.mxu0 0
        %1731 = vmatprep.subr.bf16.mxu0 0
        %1732 = vmatpush1.bf16.msra.mxu0 0
        %1733 = vmatprep.subr.bf16.mxu0 0
        %1734 = vmatpush1.bf16.msra.mxu0 0
        %1735 = vmatprep.subr.bf16.mxu0 0
        %1736 = vmatpush1.bf16.msra.mxu0 0
        %1737 = vmatprep.subr.bf16.mxu0 0
        %1738 = vmatpush1.bf16.msra.mxu0 0
        %1739 = vmatprep.mubr.bf16.mxu0 0
        %1740 = vmatmul.mubr.bf16.gmra.mrb[0].mxu0 %v1663
        %v1741 = vpop.f32.mrb[0].mxu0
        %v1742 = vadd.f32 %v1699, %v1741
        %v1743 = vpop.f32.mrb[0].mxu0
        %v1744 = vadd.f32 %v1701, %v1743
        %v1745 = vpop.f32.mrb[0].mxu0
        %v1746 = vadd.f32 %v1703, %v1745
        %v1747 = vpop.f32.mrb[0].mxu0
        %v1748 = vadd.f32 %v1705, %v1747
        %1749 = vdwg.mxu0
        %1750 = vmatprep.subr.bf16.mxu0 %v755
        %1751 = vmatpush1.bf16.msra.mxu0 %v754
        %1752 = vmatprep.subr.bf16.mxu0 %v759
        %1753 = vmatpush1.bf16.msra.mxu0 %v758
        %1754 = vmatprep.subr.bf16.mxu0 %v763
        %1755 = vmatpush1.bf16.msra.mxu0 %v762
        %1756 = vmatprep.subr.bf16.mxu0 %v767
        %1757 = vmatpush1.bf16.msra.mxu0 %v766
        %1758 = vmatprep.subr.bf16.mxu0 %v771
        %1759 = vmatpush1.bf16.msra.mxu0 %v770
        %1760 = vmatprep.subr.bf16.mxu0 %v775
        %1761 = vmatpush1.bf16.msra.mxu0 %v774
        %1762 = vmatprep.subr.bf16.mxu0 %v779
        %1763 = vmatpush1.bf16.msra.mxu0 %v778
        %1764 = vmatprep.subr.bf16.mxu0 %v783
        %1765 = vmatpush1.bf16.msra.mxu0 %v782
        %1766 = vmatprep.subr.bf16.mxu0 %v787
        %1767 = vmatpush1.bf16.msra.mxu0 %v786
        %1768 = vmatprep.subr.bf16.mxu0 %v791
        %1769 = vmatpush1.bf16.msra.mxu0 %v790
        %1770 = vmatprep.subr.bf16.mxu0 %v795
        %1771 = vmatpush1.bf16.msra.mxu0 %v794
        %1772 = vmatprep.subr.bf16.mxu0 %v799
        %1773 = vmatpush1.bf16.msra.mxu0 %v798
        %1774 = vmatprep.subr.bf16.mxu0 %v803
        %1775 = vmatpush1.bf16.msra.mxu0 %v802
        %1776 = vmatprep.subr.bf16.mxu0 %v807
        %1777 = vmatpush1.bf16.msra.mxu0 %v806
        %1778 = vmatprep.subr.bf16.mxu0 %v811
        %1779 = vmatpush1.bf16.msra.mxu0 %v810
        %1780 = vmatprep.subr.bf16.mxu0 %v815
        %1781 = vmatpush1.bf16.msra.mxu0 %v814
        %1782 = vmatprep.mubr.bf16.mxu0 %v1662
        %1783 = vmatmul.mubr.bf16.gmra.mrb[0].mxu0 %v1661
        %v1784 = vpop.f32.mrb[0].mxu0
        %v1785 = vadd.f32 %v303, %v1784
        %v1786 = vpop.f32.mrb[0].mxu0
        %v1787 = vadd.f32 %v307, %v1786
        %v1788 = vpop.f32.mrb[0].mxu0
        %v1789 = vadd.f32 %v303, %v1788
        %v1790 = vpop.f32.mrb[0].mxu0
        %v1791 = vadd.f32 %v307, %v1790
        %1792 = vdwg.mxu0
        %1793 = vmatprep.subr.bf16.mxu0 %v819
        %1794 = vmatpush1.bf16.msra.mxu0 %v818
        %1795 = vmatprep.subr.bf16.mxu0 %v823
        %1796 = vmatpush1.bf16.msra.mxu0 %v822
        %1797 = vmatprep.subr.bf16.mxu0 %v827
        %1798 = vmatpush1.bf16.msra.mxu0 %v826
        %1799 = vmatprep.subr.bf16.mxu0 %v831
        %1800 = vmatpush1.bf16.msra.mxu0 %v830
        %1801 = vmatprep.subr.bf16.mxu0 %v835
        %1802 = vmatpush1.bf16.msra.mxu0 %v834
        %1803 = vmatprep.subr.bf16.mxu0 %v839
        %1804 = vmatpush1.bf16.msra.mxu0 %v838
        %1805 = vmatprep.subr.bf16.mxu0 %v843
        %1806 = vmatpush1.bf16.msra.mxu0 %v842
        %1807 = vmatprep.subr.bf16.mxu0 %v847
        %1808 = vmatpush1.bf16.msra.mxu0 %v846
        %1809 = vmatprep.subr.bf16.mxu0 0
        %1810 = vmatpush1.bf16.msra.mxu0 0
        %1811 = vmatprep.subr.bf16.mxu0 0
        %1812 = vmatpush1.bf16.msra.mxu0 0
        %1813 = vmatprep.subr.bf16.mxu0 0
        %1814 = vmatpush1.bf16.msra.mxu0 0
        %1815 = vmatprep.subr.bf16.mxu0 0
        %1816 = vmatpush1.bf16.msra.mxu0 0
        %1817 = vmatprep.subr.bf16.mxu0 0
        %1818 = vmatpush1.bf16.msra.mxu0 0
        %1819 = vmatprep.subr.bf16.mxu0 0
        %1820 = vmatpush1.bf16.msra.mxu0 0
        %1821 = vmatprep.subr.bf16.mxu0 0
        %1822 = vmatpush1.bf16.msra.mxu0 0
        %1823 = vmatprep.subr.bf16.mxu0 0
        %1824 = vmatpush1.bf16.msra.mxu0 0
        %1825 = vmatprep.mubr.bf16.mxu0 0
        %1826 = vmatmul.mubr.bf16.gmra.mrb[0].mxu0 %v1663
        %v1827 = vpop.f32.mrb[0].mxu0
        %v1828 = vadd.f32 %v1785, %v1827
        %v1829 = vpop.f32.mrb[0].mxu0
        %v1830 = vadd.f32 %v1787, %v1829
        %v1831 = vpop.f32.mrb[0].mxu0
        %v1832 = vadd.f32 %v1789, %v1831
        %v1833 = vpop.f32.mrb[0].mxu0
        %v1834 = vadd.f32 %v1791, %v1833
        %1835 = vdwg.mxu0
        %v1836 = vmax.f32 %v1742, 0.0
        %v1837 = vmax.f32 %v1744, 0.0
        %v1838 = vmax.f32 %v1828, 0.0
        %v1839 = vmax.f32 %v1830, 0.0
        %v1840 = vmax.f32 %v1746, 0.0
        %v1841 = vmax.f32 %v1748, 0.0
        %v1842 = vmax.f32 %v1832, 0.0
        %v1843 = vmax.f32 %v1834, 0.0
        %v1844 = vpack.c.bf16 %v1840, %v1836
        %v1845 = vpack.c.bf16 %v1841, %v1837
        %v1846 = vpack.c.bf16 %v1842, %v1838
        %v1847 = vpack.c.bf16 %v1843, %v1839
        %1848 = vmatprep.subr.bf16.mxu0 0
        %1849 = vmatpush1.bf16.msra.mxu0 %v1320
        %1850 = vmatprep.subr.bf16.mxu0 0
        %1851 = vmatpush1.bf16.msra.mxu0 %v1321
        %1852 = vmatprep.subr.bf16.mxu0 0
        %1853 = vmatpush1.bf16.msra.mxu0 %v1322
        %1854 = vmatprep.subr.bf16.mxu0 0
        %1855 = vmatpush1.bf16.msra.mxu0 %v1323
        %1856 = vmatprep.subr.bf16.mxu0 0
        %1857 = vmatpush1.bf16.msra.mxu0 %v1324
        %1858 = vmatprep.subr.bf16.mxu0 0
        %1859 = vmatpush1.bf16.msra.mxu0 %v1325
        %1860 = vmatprep.subr.bf16.mxu0 0
        %1861 = vmatpush1.bf16.msra.mxu0 %v1326
        %1862 = vmatprep.subr.bf16.mxu0 0
        %1863 = vmatpush1.bf16.msra.mxu0 %v1327
        %1864 = vmatprep.subr.bf16.mxu0 0
        %1865 = vmatpush1.bf16.msra.mxu0 %v1328
        %1866 = vmatprep.subr.bf16.mxu0 0
        %1867 = vmatpush1.bf16.msra.mxu0 %v1329
        %1868 = vmatprep.subr.bf16.mxu0 0
        %1869 = vmatpush1.bf16.msra.mxu0 %v1330
        %1870 = vmatprep.subr.bf16.mxu0 0
        %1871 = vmatpush1.bf16.msra.mxu0 %v1331
        %1872 = vmatprep.subr.bf16.mxu0 0
        %1873 = vmatpush1.bf16.msra.mxu0 %v1332
        %1874 = vmatprep.subr.bf16.mxu0 0
        %1875 = vmatpush1.bf16.msra.mxu0 %v1333
        %1876 = vmatprep.subr.bf16.mxu0 0
        %1877 = vmatpush1.bf16.msra.mxu0 %v1334
        %1878 = vmatprep.subr.bf16.mxu0 0
        %1879 = vmatpush1.bf16.msra.mxu0 %v1335
        %1880 = vmatprep.mubr.bf16.mxu0 %v1845
        %1881 = vmatmul.mubr.bf16.gmra.mrb[0].mxu0 %v1844
        %v1882 = vpop.f32.mrb[0].mxu0
        %v1883 = vadd.f32 0.0, %v1882
        %v1884 = vpop.f32.mrb[0].mxu0
        %v1885 = vpop.f32.mrb[0].mxu0
        %v1886 = vadd.f32 0.0, %v1885
        %v1887 = vpop.f32.mrb[0].mxu0
        %1888 = vdwg.mxu0
        %1889 = vmatprep.subr.bf16.mxu0 0
        %1890 = vmatpush1.bf16.msra.mxu0 %v1336
        %1891 = vmatprep.subr.bf16.mxu0 0
        %1892 = vmatpush1.bf16.msra.mxu0 %v1337
        %1893 = vmatprep.subr.bf16.mxu0 0
        %1894 = vmatpush1.bf16.msra.mxu0 %v1338
        %1895 = vmatprep.subr.bf16.mxu0 0
        %1896 = vmatpush1.bf16.msra.mxu0 %v1339
        %1897 = vmatprep.subr.bf16.mxu0 0
        %1898 = vmatpush1.bf16.msra.mxu0 %v1340
        %1899 = vmatprep.subr.bf16.mxu0 0
        %1900 = vmatpush1.bf16.msra.mxu0 %v1341
        %1901 = vmatprep.subr.bf16.mxu0 0
        %1902 = vmatpush1.bf16.msra.mxu0 %v1342
        %1903 = vmatprep.subr.bf16.mxu0 0
        %1904 = vmatpush1.bf16.msra.mxu0 %v1343
        %1905 = vmatprep.subr.bf16.mxu0 0
        %1906 = vmatpush1.bf16.msra.mxu0 %v1344
        %1907 = vmatprep.subr.bf16.mxu0 0
        %1908 = vmatpush1.bf16.msra.mxu0 %v1345
        %1909 = vmatprep.subr.bf16.mxu0 0
        %1910 = vmatpush1.bf16.msra.mxu0 %v1346
        %1911 = vmatprep.subr.bf16.mxu0 0
        %1912 = vmatpush1.bf16.msra.mxu0 %v1347
        %1913 = vmatprep.subr.bf16.mxu0 0
        %1914 = vmatpush1.bf16.msra.mxu0 %v1348
        %1915 = vmatprep.subr.bf16.mxu0 0
        %1916 = vmatpush1.bf16.msra.mxu0 %v1349
        %1917 = vmatprep.subr.bf16.mxu0 0
        %1918 = vmatpush1.bf16.msra.mxu0 %v1350
        %1919 = vmatprep.subr.bf16.mxu0 0
        %1920 = vmatpush1.bf16.msra.mxu0 %v1351
        %1921 = vmatprep.mubr.bf16.mxu0 %v1847
        %1922 = vmatmul.mubr.bf16.gmra.mrb[0].mxu0 %v1846
        %v1923 = vpop.f32.mrb[0].mxu0
        %v1924 = vadd.f32 %v1883, %v1923
        %v1925 = vpop.f32.mrb[0].mxu0
        %v1926 = vpop.f32.mrb[0].mxu0
        %v1927 = vadd.f32 %v1886, %v1926
        %v1928 = vpop.f32.mrb[0].mxu0
        %1929 = vdwg.mxu0
        %v1930 = vadd.f32 %v1647, %v1924
        %v1931 = vadd.f32 %v1648, %v1927
        %v1932 = vrot.slane %v1930, 7
        %v1933 = vrot.slane %v1931, 7
        %v1934 = vsel %vm353, %v1932, %v1933
        %v1935 = vsel %vm353, %v1933, %v1932
        %v1936 = vmul.f32 %v1935, %v343
        %v1937 = vmul.f32 %v1934, %v344
        %v1938 = vrot.slane %v1930, 1
        %v1939 = vrot.slane %v1931, 1
        %v1940 = vsel %vm360, %v1938, %v1939
        %v1941 = vsel %vm360, %v1939, %v1938
        %v1942 = vmul.f32 %v1940, %v349
        %v1943 = vmul.f32 %v1941, %v350
        %vm1944 = vcmp.gt.f32.partialorder %v1647, 0.1
        %vm1945 = vcmp.gt.f32.partialorder %v1648, 0.1
        %v1946 = vsel %vm1944, 1, 0
        %v1947 = vsel %vm1945, 1, 0
        %v1948 = vcvt.s32.f32 %v1946
        %v1949 = vcvt.s32.f32 %v1947
        %vm1950 = vcmp.gt.f32.partialorder %v1659, 0.1
        %vm1951 = vcmp.gt.f32.partialorder %v1660, 0.1
        %v1952 = vsel %vm1950, 1, 0
        %v1953 = vsel %vm1951, 1, 0
        %v1954 = vcvt.s32.f32 %v1952
        %v1955 = vcvt.s32.f32 %v1953
        %v1956 = vadd.f32 %v1948, %v1954
        %v1957 = vadd.f32 %v1949, %v1955
        %vm1958 = vcmp.gt.f32.partialorder %v1653, 0.1
        %vm1959 = vcmp.gt.f32.partialorder %v1654, 0.1
        %v1960 = vsel %vm1958, 1, 0
        %v1961 = vsel %vm1959, 1, 0
        %v1962 = vcvt.s32.f32 %v1960
        %v1963 = vcvt.s32.f32 %v1961
        %v1964 = vadd.f32 %v1956, %v1962
        %v1965 = vadd.f32 %v1957, %v1963
        %vm1966 = vcmp.gt.f32.partialorder %v1930, 0.1
        %vm1967 = vcmp.gt.f32.partialorder %v1931, 0.1
        %v1968 = vsel %vm1966, 1, 0
        %v1969 = vsel %vm1967, 1, 0
        %v1970 = vcvt.s32.f32 %v1968
        %v1971 = vcvt.s32.f32 %v1969
        %vm1972 = vcmp.gt.f32.partialorder %v1942, 0.1
        %vm1973 = vcmp.gt.f32.partialorder %v1943, 0.1
        %v1974 = vsel %vm1972, 1, 0
        %v1975 = vsel %vm1973, 1, 0
        %v1976 = vcvt.s32.f32 %v1974
        %v1977 = vcvt.s32.f32 %v1975
        %v1978 = vadd.f32 %v1970, %v1976
        %v1979 = vadd.f32 %v1971, %v1977
        %vm1980 = vcmp.gt.f32.partialorder %v1936, 0.1
        %vm1981 = vcmp.gt.f32.partialorder %v1937, 0.1
        %v1982 = vsel %vm1980, 1, 0
        %v1983 = vsel %vm1981, 1, 0
        %v1984 = vcvt.s32.f32 %v1982
        %v1985 = vcvt.s32.f32 %v1983
        %v1986 = vadd.f32 %v1978, %v1984
        %v1987 = vadd.f32 %v1979, %v1985
        %v1988 = vpack.c.bf16 %v1965, %v1964
        %v1989 = vpack.c.bf16 %v1987, %v1986
        %1990 = vmatprep.subr.bf16.mxu0 0
        %1991 = vmatpush1.bf16.msra.mxu0 %v1574
        %1992 = vmatprep.subr.bf16.mxu0 0
        %1993 = vmatpush1.bf16.msra.mxu0 %v1575
        %1994 = vmatprep.subr.bf16.mxu0 0
        %1995 = vmatpush1.bf16.msra.mxu0 %v1576
        %1996 = vmatprep.subr.bf16.mxu0 0
        %1997 = vmatpush1.bf16.msra.mxu0 %v1577
        %1998 = vmatprep.subr.bf16.mxu0 0
        %1999 = vmatpush1.bf16.msra.mxu0 %v1578
        %2000 = vmatprep.subr.bf16.mxu0 0
        %2001 = vmatpush1.bf16.msra.mxu0 %v1579
        %2002 = vmatprep.subr.bf16.mxu0 0
        %2003 = vmatpush1.bf16.msra.mxu0 %v1580
        %2004 = vmatprep.subr.bf16.mxu0 0
        %2005 = vmatpush1.bf16.msra.mxu0 %v1581
        %2006 = vmatprep.subr.bf16.mxu0 0
        %2007 = vmatpush1.bf16.msra.mxu0 0
        %2008 = vmatprep.subr.bf16.mxu0 0
        %2009 = vmatpush1.bf16.msra.mxu0 0
        %2010 = vmatprep.subr.bf16.mxu0 0
        %2011 = vmatpush1.bf16.msra.mxu0 0
        %2012 = vmatprep.subr.bf16.mxu0 0
        %2013 = vmatpush1.bf16.msra.mxu0 0
        %2014 = vmatprep.subr.bf16.mxu0 0
        %2015 = vmatpush1.bf16.msra.mxu0 0
        %2016 = vmatprep.subr.bf16.mxu0 0
        %2017 = vmatpush1.bf16.msra.mxu0 0
        %2018 = vmatprep.subr.bf16.mxu0 0
        %2019 = vmatpush1.bf16.msra.mxu0 0
        %2020 = vmatprep.subr.bf16.mxu0 0
        %2021 = vmatpush1.bf16.msra.mxu0 0
        %2022 = vmatprep.mubr.bf16.mxu0 0
        %2023 = vmatmul.mubr.bf16.gmra.mrb[0].mxu0 %v1988
        %v2024 = vpop.f32.mrb[0].mxu0
        %v2025 = vadd.f32 0.0, %v2024
        %v2026 = vpop.f32.mrb[0].mxu0
        %v2027 = vpop.f32.mrb[0].mxu0
        %v2028 = vadd.f32 0.0, %v2027
        %v2029 = vpop.f32.mrb[0].mxu0
        %2030 = vmatprep.mubr.bf16.mxu0 0
        %2031 = vmatmul.mubr.bf16.gmra.mrb[0].mxu0 %v1989
        %v2032 = vpop.f32.mrb[0].mxu0
        %v2033 = vadd.f32 0.0, %v2032
        %v2034 = vpop.f32.mrb[0].mxu0
        %v2035 = vpop.f32.mrb[0].mxu0
        %v2036 = vadd.f32 0.0, %v2035
        %v2037 = vpop.f32.mrb[0].mxu0
        %2038 = vdwg.mxu0
        %v2039 = vmin.f32 %v2025, %v2033
        %v2040 = vmin.f32 %v2028, %v2036
        %vm2041 = vcmp.gt.f32.partialorder %v2039, 0.0
        %vm2042 = vcmp.gt.f32.partialorder %v2040, 0.0
        %v2043 = vsel %vm2041, 1, 0
        %v2044 = vsel %vm2042, 1, 0
        %v2045 = vcvt.s32.f32 %v2043
        %v2046 = vcvt.s32.f32 %v2044
        %v2047 = vmul.f32 %v1930, %v2045
        %v2048 = vmul.f32 %v1931, %v2046
        %2049 = vst [vmem:[%s286] sm:$0xff] %v2047
        %2050 = vst [vmem:[%s286 + $0x8] sm:$0xff] %v2048
        %s2051 = sand.u32 %s142, 1
        %s2052 = scalar_lea.sflag [#allocation4], %s2051
        %s2053 = sand.u32 %s142, 1
        %s2054 = smul.addr %s2053, 16
        %s2055 = scalar_lea.vmem [#allocation10], %s2054
        // Predicated region
        $region57: #{tpu_custom_call.1} parent=39 // pred_check
          %p2056 = pneg %p152
        $region58: #{tpu_custom_call.1} parent=39 // pred_check_branch
          %2058 = sbr.rel (%p2056) target = $region60
        $region59: #{tpu_custom_call.1} parent=39 // pred_region
          %s2060 = ssub.s32 256, 256
          %2061 = vsyncadd %s2052, %s2060
          %s2062 = smul.addr %s24, 2
          %s2063 = smul.addr %s2062, 128
          %s2064 = scalar_lea.hbm %s5, %s2063
          %s2065 = sshll.u32 %s2055, 4
          %s2066 = int_to_ptr.vmem [resolvable:$true] %s2065
          %2071 = dma.vmem_to_hbm [thread:$0]  %s2066, 256, %s2064, %s2052, 128, 128, 8
        $region60: #{tpu_custom_call.1} parent=39 // pred_fallthru
          _
      $region40: #{tpu_custom_call.1} parent=5 // pred_fallthru
        _
      %p2072 = scmp.le.s32.totalorder 2, %s19
      // Predicated region
      $region61: #{tpu_custom_call.1} parent=5 // pred_check
        %p2073 = pneg %p2072
      $region62: #{tpu_custom_call.1} parent=5 // pred_check_branch
        %2075 = sbr.rel (%p2073) target = $region64
      $region63: #{tpu_custom_call.1} parent=5 // pred_region
        %s2076 = ssub.s32 %s19, 2
        // Predicated region
        $region65: #{tpu_custom_call.1} parent=63 // pred_check
          %p2077 = pneg %p158
        $region66: #{tpu_custom_call.1} parent=63 // pred_check_branch
          %2079 = sbr.rel (%p2077) target = $region68
        $region67: #{tpu_custom_call.1} parent=63 // pred_region
          %s2080 = sand.u32 %s143, 1
          %s2081 = scalar_lea.sflag [#allocation4], %s2080
          %s2082 = sand.u32 %s143, 1
          %s2083 = smul.addr %s2082, 16
          %s2084 = scalar_lea.vmem [#allocation10], %s2083
          %2085 = dma.done %s2081, 256
        $region68: #{tpu_custom_call.1} parent=63 // pred_fallthru
          _
      $region64: #{tpu_custom_call.1} parent=5 // pred_fallthru
        _
    $region6: #{tpu_custom_call.1} parent=1 // loop_footer
      %s23 = sadd.s32 1, %s19
    $region7: #{tpu_custom_call.1} parent=1 // loop_footer_branch
      %18 = sbr.rel target = $region3
    $region8: #{tpu_custom_call.1} parent=1 // loop_exit
      _
    %2086 = vsyncpa [#allocation3], 1
    %s2087 = scalar_lea.sflag [#allocation3], 1
    %2088 = vsyncpa %s2087, 1
    %2089 = vsyncpa [#allocation6], 1
    %2090 = vsyncpa [#allocation9], 1
    %2091 = vsyncpa [#allocation4], 1
    %s2092 = scalar_lea.sflag [#allocation4], 1
    %2093 = vsyncpa %s2092, 1

</llo_original>
